<compile_context>
chip_gen: v7x
topology: tpu7x:2x2x1
jax: 0.10.0
libtpu: 0.0.40
codegen_flags: <defaults>
</compile_context>

<pallas_src>
import jax
import jax.numpy as jnp
from jax.experimental import pallas as pl
from jax.experimental.pallas import tpu as pltpu


def _round_up(x: int, m: int) -> int:
    return ((x + m - 1) // m) * m


def _pick_batch_tile(batch: int, block_b: int) -> int:
    """Large tile to amortize grid-step overhead, but keep >= 2 grid steps so
    v7x's second TensorCore gets work (harmless on v5e/v6e)."""
    if batch <= 8:
        return batch                       # full-extent block, no alignment needed
    tb = min(block_b, batch)
    half = _round_up(pl.cdiv(batch, 2), 8)
    tb = min(tb, half)
    tb = max(8, (tb // 8) * 8)             # sublane-aligned row tile
    return tb


def _make_kernel(n_cat: int, bias_lane: int):
    def kernel(cat_ref, num_ref, w_ref, cp_ref, out_ref):
        tb = out_ref.shape[0]
        v_rows = cp_ref.shape[0]

        # --- one-hot(categories + offsets) plus the constant bias column,
        # built as a VALUE (no VMEM scratch round-trip).
        lane = jax.lax.broadcasted_iota(jnp.int32, (tb, v_rows), 1)
        cats = cat_ref[...]                               # (tb, n_cat) int32
        masks = [lane == bias_lane]
        for j in range(n_cat):                            # n_cat small & static
            masks.append(lane == cats[:, j][:, None])
        # Balanced OR-tree; features occupy disjoint cumulative-offset ranges,
        # so OR of per-feature one-hots equals their sum.
        while len(masks) > 1:
            nxt = [jnp.logical_or(masks[i], masks[i + 1])
                   for i in range(0, len(masks) - 1, 2)]
            if len(masks) % 2:
                nxt.append(masks[-1])
            masks = nxt
        onehot = masks[0].astype(cp_ref.dtype)            # 0/1 exact, bf16-safe

        # --- two MXU passes, both accumulating in f32:
        #   numbers @ weight                      (tiny K, kept f32-exact)
        #   one_hot @ [cat_params ; bias ; 0pad]  (gather + sum + bias fused,
        #                                          MXU-native when cp is bf16)
        acc = jnp.dot(num_ref[...], w_ref[...],
                      preferred_element_type=jnp.float32)
        acc = acc + jnp.dot(onehot, cp_ref[...],
                            preferred_element_type=jnp.float32)
        out_ref[...] = acc

    return kernel


def prepare_cat_linear_params(weight, cat_params, bias, embed_sizes,
                              *, param_dtype=jnp.float32):
    """One-time parameter assembly (hoisted out of the per-call path).

    weight:     (Dn, O) float32   (= torch linear.weight.T)
    cat_params: (V, O)  float32   with V = sum(embed_sizes)
    bias:       (O,)    float32
    Returns a dict with lane-dense (O padded to 128) parameter blocks and the
    per-feature category offsets (embed_idx).
    """
    Dn, O = weight.shape
    V = cat_params.shape[0]
    assert len(embed_sizes) > 0 and sum(embed_sizes) == V

    o_pad = _round_up(max(O, 1), 128)          # lane-dense RHS / output
    v_rows = _round_up(V + 1, 8)               # +1 bias row, sublane-aligned

    w_pad = jnp.zeros((Dn, o_pad), jnp.float32).at[:, :O].set(
        weight.astype(jnp.float32))
    cp = jnp.zeros((v_rows, o_pad), jnp.float32)
    cp = cp.at[:V, :O].set(cat_params.astype(jnp.float32))
    cp = cp.at[V, :O].set(bias.astype(jnp.float32))
    cp = cp.astype(param_dtype)                # bf16 optional fast path

    sizes = jnp.asarray(embed_sizes, jnp.int32)
    offsets = jnp.cumsum(sizes) - sizes        # embed_idx, shape (Nc,)

    return dict(weight=w_pad, cat_fused=cp, offsets=offsets,
                num_size=int(Dn), out_size=int(O), bias_lane=int(V))


def cat_linear_forward(params, numbers, categories, *, block_b: int = 1024):
    """CatLinear forward via Pallas.

    numbers:    (B, Dn) float32
    categories: (B, Nc) int32 raw per-feature indices (offsets added here)
    """
    B, Dn = numbers.shape
    Nc = categories.shape[1]
    assert Dn == params["num_size"]
    # TODO(synk): numeric_size == 0 / embed_sizes == () module variants (missing
    # inputs) are not handled by this fused kernel.
    assert Dn > 0 and Nc > 0

    w = params["weight"]                       # (Dn, Opad) f32, resident
    cp = params["cat_fused"]                   # (v_rows, Opad), resident
    O = params["out_size"]
    o_pad = w.shape[1]
    v_rows = cp.shape[0]

    cats = categories.astype(jnp.int32) + params["offsets"][None, :]

    tb = _pick_batch_tile(B, block_b)
    grid = (pl.cdiv(B, tb),)

    # Explicit VMEM budget (review: re-derive for v7x's smaller VMEM); inputs
    # and the output are double-buffered, params are resident.
    dbl_buffered = 2 * tb * (Nc * 4 + Dn * 4 + o_pad * 4)
    resident = w.size * 4 + cp.size * cp.dtype.itemsize
    vmem_budget = int(min(max(2 * (dbl_buffered + resident), 8 << 20), 48 << 20))

    cost = pl.CostEstimate(
        flops=2 * B * o_pad * (Dn + v_rows),
        transcendentals=0,
        bytes_accessed=(numbers.size * 4 + cats.size * 4 + B * o_pad * 4
                        + w.size * 4 + cp.size * cp.dtype.itemsize))

    out = pl.pallas_call(
        _make_kernel(Nc, params["bias_lane"]),
        out_shape=jax.ShapeDtypeStruct((B, o_pad), jnp.float32),
        grid=grid,
        in_specs=[
            pl.BlockSpec((tb, Nc), lambda i: (i, 0)),        # categories (+offsets)
            pl.BlockSpec((tb, Dn), lambda i: (i, 0)),        # numbers
            pl.BlockSpec((Dn, o_pad), lambda i: (0, 0)),     # weight (resident)
            pl.BlockSpec((v_rows, o_pad), lambda i: (0, 0)), # cat_params+bias (resident)
        ],
        out_specs=pl.BlockSpec((tb, o_pad), lambda i: (i, 0)),
        compiler_params=pltpu.CompilerParams(
            dimension_semantics=("parallel",),               # v7x megacore split
            vmem_limit_bytes=vmem_budget),
        cost_estimate=cost,
    )(cats, numbers.astype(jnp.float32), w, cp)

    return out[:, :O]                                        # back to true O


if __name__ == "__main__":
    # Shapes consistent with CatLinear; batch large enough to exercise a
    # multi-step grid (grid length 2 after the tile cap).
    B = 1024
    numeric_size = 32
    embed_sizes = (3, 5, 7, 4)
    output_size = 8
    Nc = len(embed_sizes)
    V = sum(embed_sizes)

    key = jax.random.PRNGKey(0)
    k_num, k_cat, k_w, k_emb, k_b = jax.random.split(key, 5)

    numbers = jax.random.normal(k_num, (B, numeric_size), dtype=jnp.float32)
    cat_cols = [
        jax.random.randint(jax.random.fold_in(k_cat, j), (B, 1), 0, sz,
                           dtype=jnp.int32)
        for j, sz in enumerate(embed_sizes)
    ]
    categories = jnp.concatenate(cat_cols, axis=1)           # (B, Nc) int32

    # PyTorch initializes these params to zero; use deterministic random values
    # so the kernel does non-trivial work.  weight is passed as linear.weight.T.
    weight = 0.1 * jax.random.normal(k_w, (numeric_size, output_size),
                                     dtype=jnp.float32)
    cat_params = 0.1 * jax.random.normal(k_emb, (V, output_size),
                                         dtype=jnp.float32)
    bias = 0.1 * jax.random.normal(k_b, (output_size,), dtype=jnp.float32)

    # Pure-JAX reference (PyTorch forward semantics, f32).
    sizes = jnp.asarray(embed_sizes, jnp.int32)
    offsets = (jnp.cumsum(sizes) - sizes)[None, :]
    ref = (bias[None, :]
           + numbers @ weight
           + jnp.take(cat_params, categories + offsets, axis=0).sum(axis=1))

    # f32 params: exact match against the f32 reference.
    params_f32 = prepare_cat_linear_params(weight, cat_params, bias, embed_sizes,
                                           param_dtype=jnp.float32)
    out_f32 = jax.block_until_ready(cat_linear_forward(params_f32, numbers, categories))
    assert out_f32.shape == (B, output_size)
    assert jnp.allclose(out_f32, ref, atol=1e-5, rtol=1e-5), "f32 mismatch vs reference"

    # bf16 categorical params (MXU-native fast path); looser tolerance.
    params_bf16 = prepare_cat_linear_params(weight, cat_params, bias, embed_sizes,
                                            param_dtype=jnp.bfloat16)
    out_bf16 = jax.block_until_ready(cat_linear_forward(params_bf16, numbers, categories))
    assert jnp.allclose(out_bf16, ref, atol=2e-2, rtol=2e-2), "bf16 mismatch vs reference"

    print("KERNEL_OK")
</pallas_src>

<mosaic_0001>
module attributes {stable_mosaic.version = 11 : i64} {
  func.func @kernel(%arg0: i32, %arg1: memref<512x4xi32, #tpu.memory_space<vmem>>, %arg2: memref<512x32xf32, #tpu.memory_space<vmem>>, %arg3: memref<32x128xf32, #tpu.memory_space<vmem>>, %arg4: memref<24x128xf32, #tpu.memory_space<vmem>>, %arg5: memref<512x128xf32, #tpu.memory_space<vmem>>) attributes {dimension_semantics = [#tpu.dimension_semantics<parallel>], iteration_bounds = array<i64: 2>, scalar_prefetch = 0 : i64, scratch_operands = 0 : i64, tpu.core_type = #tpu.core_type<tc>, window_params = [{transform_indices = @transform_0, window_bounds = array<i64: 512, 4>}, {transform_indices = @transform_1, window_bounds = array<i64: 512, 32>}, {pipeline_mode = #tpu.pipeline_mode<synchronous>, transform_indices = @transform_2, window_bounds = array<i64: 32, 128>}, {pipeline_mode = #tpu.pipeline_mode<synchronous>, transform_indices = @transform_3, window_bounds = array<i64: 24, 128>}, {transform_indices = @transform_4, window_bounds = array<i64: 512, 128>}]} {
    %0 = tpu.iota {dimensions = array<i32: 1>} : vector<512x24xi32>
    %c0 = arith.constant 0 : index
    %c0_0 = arith.constant 0 : index
    %1 = vector.load %arg1[%c0, %c0_0] : memref<512x4xi32, #tpu.memory_space<vmem>>, vector<512x4xi32>
    %c19_i32 = arith.constant 19 : i32
    %2 = vector.broadcast %c19_i32 : i32 to vector<512x24xi32>
    %3 = arith.cmpi eq, %0, %2 : vector<512x24xi32>
    %4 = vector.extract_strided_slice %1 {offsets = [0, 0], sizes = [512, 1], strides = [1, 1]} : vector<512x4xi32> to vector<512x1xi32>
    %5 = vector.shape_cast %4 : vector<512x1xi32> to vector<512xi32>
    %6 = vector.shape_cast %5 : vector<512xi32> to vector<512x1xi32>
    %7 = vector.broadcast %6 : vector<512x1xi32> to vector<512x24xi32>
    %8 = arith.cmpi eq, %0, %7 : vector<512x24xi32>
    %9 = vector.extract_strided_slice %1 {offsets = [0, 1], sizes = [512, 1], strides = [1, 1]} : vector<512x4xi32> to vector<512x1xi32>
    %10 = vector.shape_cast %9 : vector<512x1xi32> to vector<512xi32>
    %11 = vector.shape_cast %10 : vector<512xi32> to vector<512x1xi32>
    %12 = vector.broadcast %11 : vector<512x1xi32> to vector<512x24xi32>
    %13 = arith.cmpi eq, %0, %12 : vector<512x24xi32>
    %14 = vector.extract_strided_slice %1 {offsets = [0, 2], sizes = [512, 1], strides = [1, 1]} : vector<512x4xi32> to vector<512x1xi32>
    %15 = vector.shape_cast %14 : vector<512x1xi32> to vector<512xi32>
    %16 = vector.shape_cast %15 : vector<512xi32> to vector<512x1xi32>
    %17 = vector.broadcast %16 : vector<512x1xi32> to vector<512x24xi32>
    %18 = arith.cmpi eq, %0, %17 : vector<512x24xi32>
    %19 = vector.extract_strided_slice %1 {offsets = [0, 3], sizes = [512, 1], strides = [1, 1]} : vector<512x4xi32> to vector<512x1xi32>
    %20 = vector.shape_cast %19 : vector<512x1xi32> to vector<512xi32>
    %21 = vector.shape_cast %20 : vector<512xi32> to vector<512x1xi32>
    %22 = vector.broadcast %21 : vector<512x1xi32> to vector<512x24xi32>
    %23 = arith.cmpi eq, %0, %22 : vector<512x24xi32>
    %24 = arith.ori %3, %8 : vector<512x24xi1>
    %25 = arith.ori %13, %18 : vector<512x24xi1>
    %26 = arith.ori %24, %25 : vector<512x24xi1>
    %27 = arith.ori %26, %23 : vector<512x24xi1>
    %28 = arith.extui %27 : vector<512x24xi1> to vector<512x24xi32>
    %29 = arith.sitofp %28 : vector<512x24xi32> to vector<512x24xf32>
    %c0_1 = arith.constant 0 : index
    %c0_2 = arith.constant 0 : index
    %30 = vector.load %arg2[%c0_1, %c0_2] : memref<512x32xf32, #tpu.memory_space<vmem>>, vector<512x32xf32>
    %c0_3 = arith.constant 0 : index
    %c0_4 = arith.constant 0 : index
    %31 = vector.load %arg3[%c0_3, %c0_4] : memref<32x128xf32, #tpu.memory_space<vmem>>, vector<32x128xf32>
    %cst = arith.constant dense<0.000000e+00> : vector<512x128xf32>
    %32 = tpu.matmul %30, %31, %cst {dimension_numbers = #tpu.dot_dimension_numbers<[1], [0], [0], [1], [0, 0, 1, 1], [], []>} : vector<512x32xf32>, vector<32x128xf32>, vector<512x128xf32> -> vector<512x128xf32>
    %c0_5 = arith.constant 0 : index
    %c0_6 = arith.constant 0 : index
    %33 = vector.load %arg4[%c0_5, %c0_6] : memref<24x128xf32, #tpu.memory_space<vmem>>, vector<24x128xf32>
    %cst_7 = arith.constant dense<0.000000e+00> : vector<512x128xf32>
    %34 = tpu.matmul %29, %33, %cst_7 {dimension_numbers = #tpu.dot_dimension_numbers<[1], [0], [0], [1], [0, 0, 1, 1], [], []>} : vector<512x24xf32>, vector<24x128xf32>, vector<512x128xf32> -> vector<512x128xf32>
    %35 = arith.addf %32, %34 : vector<512x128xf32>
    %c0_8 = arith.constant 0 : index
    %c0_9 = arith.constant 0 : index
    %36 = vector.load %arg5[%c0_8, %c0_9] : memref<512x128xf32, #tpu.memory_space<vmem>>, vector<512x128xf32>
    tpu.vector_store %arg5[%c0_8, %c0_9], %35 {strides = array<i32>} : memref<512x128xf32, #tpu.memory_space<vmem>>, vector<512x128xf32>,
    return
  }
  func.func @transform_0(%arg0: i32) -> (i32, i32) {
    %c0_i32 = arith.constant 0 : i32
    %c0_i32_0 = arith.constant 0 : i32
    return %arg0, %c0_i32 : i32, i32
  }
  func.func @transform_1(%arg0: i32) -> (i32, i32) {
    %c0_i32 = arith.constant 0 : i32
    %c0_i32_0 = arith.constant 0 : i32
    return %arg0, %c0_i32 : i32, i32
  }
  func.func @transform_2(%arg0: i32) -> (i32, i32) {
    %c0_i32 = arith.constant 0 : i32
    %c0_i32_0 = arith.constant 0 : i32
    %c0_i32_1 = arith.constant 0 : i32
    return %c0_i32, %c0_i32_0 : i32, i32
  }
  func.func @transform_3(%arg0: i32) -> (i32, i32) {
    %c0_i32 = arith.constant 0 : i32
    %c0_i32_0 = arith.constant 0 : i32
    %c0_i32_1 = arith.constant 0 : i32
    return %c0_i32, %c0_i32_0 : i32, i32
  }
  func.func @transform_4(%arg0: i32) -> (i32, i32) {
    %c0_i32 = arith.constant 0 : i32
    %c0_i32_0 = arith.constant 0 : i32
    return %arg0, %c0_i32 : i32, i32
  }
}

</mosaic_0001>

<llo_original>
// kernel: tpu_custom_call.1
$region0: #{tpu_custom_call.1}
  #allocation0 [shape = 'u32[]', space=smem, size = 0x4, offset = 0x4, fixed_abs, tag = 'smem constant byte address 0x4 - core index']
  #allocation1 [shape = 'u32[144,128]{1,0:T(1,128)}', space=vmem, size = 0x12000, scoped, tag = 'internal scratch']
  %s0 = inlined_call_operand.vmem [shape: s32[1024,4], index: 0, kind: input, shape index: {}]
  %s1 = inlined_call_operand.vmem [shape: f32[1024,32], index: 1, kind: input, shape index: {}]
  %s2 = inlined_call_operand.vmem [shape: f32[32,128], index: 2, kind: input, shape index: {}]
  %s3 = inlined_call_operand.vmem [shape: f32[24,128], index: 3, kind: input, shape index: {}]
  %s4 = inlined_call_operand.hbm [shape: f32[1024,128], index: 4, kind: output, shape index: {}]
  %s5 = sld [smem:[#allocation0]]
  $region49: #{tpu_custom_call.1} parent=0
    _
  %s7 = ssub.s32 1, %s5
  %s8 = scalar_select 0, %s7, %s5
  $region1: #{tpu_custom_call.1} parent=0
    #allocation2 [shape = 'u8[524288]{0}', space=vmem, size = 0x80000, scoped, tag = 'output window, operand 0']
    #allocation3 [shape = 's32[2]{0}', space=sflag, size = 0x8, scoped, tag = 'scoped memory for tpu_custom_call.1']
    %9 = vsyncpa [#allocation3], 0
    %s10 = scalar_lea.sflag [#allocation3], 1
    %11 = vsyncpa %s10, 0
    loop: start=0, step=1, limit=4
    $region2: #{tpu_custom_call.1} parent=1 // loop_pre_header
      _
    $region3: #{tpu_custom_call.1} parent=1 // loop_header
      %s13 = sphi 0, %s17
      %p14 = scmp.ge.s32.totalorder %s13, 4
      %s23 = sphi 0, %s25
      %s26 = sphi 0, %s23
      %s27 = sphi 0, %s26
      %s43 = sphi 0, %s27
      %s49 = sphi 0, %s51
      %s52 = sphi 0, %s49
      %s53 = sphi 0, %s52
      %s69 = sphi 0, %s53
      %s73 = sphi 0, %s73
      %s75 = sphi 0, %s73
      %s76 = sphi 0, %s75
      %s90 = sphi 0, %s76
      %s94 = sphi 0, %s94
      %s96 = sphi 0, %s94
      %s97 = sphi 0, %s96
      %s111 = sphi 0, %s97
      %s117 = sphi 0, %s119
      %s120 = sphi 0, %s117
      %s121 = sphi 0, %s120
      %s137 = sphi 0, %s121
    $region4: #{tpu_custom_call.1} parent=1 // loop_header_branch
      %16 = sbr.rel (%p14) target = $region8
    $region5: #{tpu_custom_call.1} parent=1 // loop_body
      %s18 = ssub.s32 %s13, 1
      %s19 = ssub.s32 %s13, 2
      %s20 = sadd.s32 %s13, 1
      %s21 = ssub.s32 %s13, %s20
      %p22 = scmp.eq.s32.totalorder %s21, 0
      %s24 = sadd.s32 %s23, 1
      %s25 = scalar_select %p22, %s23, %s24
      %p28 = pneg %p22
      %p29 = scmp.eq.s32.totalorder %s13, 1
      %p30 = por %p28, %p29
      %p31 = scmp.ne.s32.totalorder %s23, %s26
      %p32 = scmp.eq.s32.totalorder %s13, 0
      %p33 = por %p31, %p32
      %p34 = scmp.ne.s32.totalorder %s23, %s26
      %p35 = scmp.eq.s32.totalorder %s18, 1
      %p36 = por %p34, %p35
      %p37 = scmp.ne.s32.totalorder %s26, %s27
      %p38 = scmp.eq.s32.totalorder %s18, 0
      %p39 = por %p37, %p38
      %p40 = scmp.ne.s32.totalorder %s26, %s27
      %p41 = scmp.eq.s32.totalorder %s19, 1
      %p42 = por %p40, %p41
      %p44 = scmp.ne.s32.totalorder %s27, %s43
      %p45 = scmp.eq.s32.totalorder %s19, 0
      %p46 = por %p44, %p45
      %s47 = ssub.s32 %s13, %s20
      %p48 = scmp.eq.s32.totalorder %s47, 0
      %s50 = sadd.s32 %s49, 1
      %s51 = scalar_select %p48, %s49, %s50
      %p54 = pneg %p48
      %p55 = scmp.eq.s32.totalorder %s13, 1
      %p56 = por %p54, %p55
      %p57 = scmp.ne.s32.totalorder %s49, %s52
      %p58 = scmp.eq.s32.totalorder %s13, 0
      %p59 = por %p57, %p58
      %p60 = scmp.ne.s32.totalorder %s49, %s52
      %p61 = scmp.eq.s32.totalorder %s18, 1
      %p62 = por %p60, %p61
      %p63 = scmp.ne.s32.totalorder %s52, %s53
      %p64 = scmp.eq.s32.totalorder %s18, 0
      %p65 = por %p63, %p64
      %p66 = scmp.ne.s32.totalorder %s52, %s53
      %p67 = scmp.eq.s32.totalorder %s19, 1
      %p68 = por %p66, %p67
      %p70 = scmp.ne.s32.totalorder %s53, %s69
      %p71 = scmp.eq.s32.totalorder %s19, 0
      %p72 = por %p70, %p71
      %s74 = sadd.s32 %s73, 1
      %p77 = scmp.eq.s32.totalorder %s13, 1
      %p78 = scmp.ne.s32.totalorder %s73, %s75
      %p79 = scmp.eq.s32.totalorder %s13, 0
      %p80 = por %p78, %p79
      %p81 = scmp.ne.s32.totalorder %s73, %s75
      %p82 = scmp.eq.s32.totalorder %s18, 1
      %p83 = por %p81, %p82
      %p84 = scmp.ne.s32.totalorder %s75, %s76
      %p85 = scmp.eq.s32.totalorder %s18, 0
      %p86 = por %p84, %p85
      %p87 = scmp.ne.s32.totalorder %s75, %s76
      %p88 = scmp.eq.s32.totalorder %s19, 1
      %p89 = por %p87, %p88
      %p91 = scmp.ne.s32.totalorder %s76, %s90
      %p92 = scmp.eq.s32.totalorder %s19, 0
      %p93 = por %p91, %p92
      %s95 = sadd.s32 %s94, 1
      %p98 = scmp.eq.s32.totalorder %s13, 1
      %p99 = scmp.ne.s32.totalorder %s94, %s96
      %p100 = scmp.eq.s32.totalorder %s13, 0
      %p101 = por %p99, %p100
      %p102 = scmp.ne.s32.totalorder %s94, %s96
      %p103 = scmp.eq.s32.totalorder %s18, 1
      %p104 = por %p102, %p103
      %p105 = scmp.ne.s32.totalorder %s96, %s97
      %p106 = scmp.eq.s32.totalorder %s18, 0
      %p107 = por %p105, %p106
      %p108 = scmp.ne.s32.totalorder %s96, %s97
      %p109 = scmp.eq.s32.totalorder %s19, 1
      %p110 = por %p108, %p109
      %p112 = scmp.ne.s32.totalorder %s97, %s111
      %p113 = scmp.eq.s32.totalorder %s19, 0
      %p114 = por %p112, %p113
      %s115 = ssub.s32 %s13, %s20
      %p116 = scmp.eq.s32.totalorder %s115, 0
      %s118 = sadd.s32 %s117, 1
      %s119 = scalar_select %p116, %s117, %s118
      %p122 = pneg %p116
      %p123 = scmp.eq.s32.totalorder %s13, 1
      %p124 = por %p122, %p123
      %p125 = scmp.ne.s32.totalorder %s117, %s120
      %p126 = scmp.eq.s32.totalorder %s13, 0
      %p127 = por %p125, %p126
      %p128 = scmp.ne.s32.totalorder %s117, %s120
      %p129 = scmp.eq.s32.totalorder %s18, 1
      %p130 = por %p128, %p129
      %p131 = scmp.ne.s32.totalorder %s120, %s121
      %p132 = scmp.eq.s32.totalorder %s18, 0
      %p133 = por %p131, %p132
      %p134 = scmp.ne.s32.totalorder %s120, %s121
      %p135 = scmp.eq.s32.totalorder %s19, 1
      %p136 = por %p134, %p135
      %p138 = scmp.ne.s32.totalorder %s121, %s137
      %p139 = scmp.eq.s32.totalorder %s19, 0
      %p140 = por %p138, %p139
      %p141 = scmp.le.s32.totalorder 1, %s13
      %p142 = scmp.lt.s32.totalorder %s13, 3
      %p143 = pnand %p141, %p142
      %p144 = pneg %p143
      // Predicated region
      $region9: #{tpu_custom_call.1} parent=5 // pred_check
        _
      $region10: #{tpu_custom_call.1} parent=5 // pred_check_branch
        %146 = sbr.rel (%p143) target = $region12
      $region11: #{tpu_custom_call.1} parent=5 // pred_region
        %s147 = ssub.s32 %s13, 1
        // Predicated region
        $region13: #{tpu_custom_call.1} parent=11 // pred_check
          %p148 = pneg %p86
        $region14: #{tpu_custom_call.1} parent=11 // pred_check_branch
          %150 = sbr.rel (%p148) target = $region16
        $region15: #{tpu_custom_call.1} parent=11 // pred_region
          _
        $region16: #{tpu_custom_call.1} parent=11 // pred_fallthru
          _
        // Predicated region
        $region17: #{tpu_custom_call.1} parent=11 // pred_check
          %p151 = pneg %p107
        $region18: #{tpu_custom_call.1} parent=11 // pred_check_branch
          %153 = sbr.rel (%p151) target = $region20
        $region19: #{tpu_custom_call.1} parent=11 // pred_region
          _
        $region20: #{tpu_custom_call.1} parent=11 // pred_fallthru
          _
      $region12: #{tpu_custom_call.1} parent=5 // pred_fallthru
        _
      %p154 = scmp.lt.s32.totalorder %s13, 2
      // Predicated region
      $region21: #{tpu_custom_call.1} parent=5 // pred_check
        %p155 = pneg %p154
      $region22: #{tpu_custom_call.1} parent=5 // pred_check_branch
        %157 = sbr.rel (%p155) target = $region24
      $region23: #{tpu_custom_call.1} parent=5 // pred_region
        // Predicated region
        $region25: #{tpu_custom_call.1} parent=23 // pred_check
          %p158 = pneg %p33
        $region26: #{tpu_custom_call.1} parent=23 // pred_check_branch
          %160 = sbr.rel (%p158) target = $region28
        $region27: #{tpu_custom_call.1} parent=23 // pred_region
          %s161 = smul.u32 64, %s13
          %p162 = scmp.lt.s32.totalorder %s161, 127
          %s163 = scalar_select %p162, %s161, 127
          %s164 = smul.addr %s163, 8
          %s165 = scalar_lea.vmem %s0, %s164
          %s166 = smul.u32 64, %s13
        $region28: #{tpu_custom_call.1} parent=23 // pred_fallthru
          _
        // Predicated region
        $region29: #{tpu_custom_call.1} parent=23 // pred_check
          %p167 = pneg %p59
        $region30: #{tpu_custom_call.1} parent=23 // pred_check_branch
          %169 = sbr.rel (%p167) target = $region32
        $region31: #{tpu_custom_call.1} parent=23 // pred_region
          %s170 = smul.u32 64, %s13
          %p171 = scmp.lt.s32.totalorder %s170, 127
          %s172 = scalar_select %p171, %s170, 127
          %s173 = smul.addr %s172, 8
          %s174 = scalar_lea.vmem %s1, %s173
          %s175 = smul.u32 64, %s13
        $region32: #{tpu_custom_call.1} parent=23 // pred_fallthru
          _
      $region24: #{tpu_custom_call.1} parent=5 // pred_fallthru
        _
      %p176 = scmp.le.s32.totalorder 1, %s13
      %p177 = scmp.lt.s32.totalorder %s13, 3
      %p178 = pnand %p176, %p177
      %p179 = pneg %p178
      // Predicated region
      $region33: #{tpu_custom_call.1} parent=5 // pred_check
        _
      $region34: #{tpu_custom_call.1} parent=5 // pred_check_branch
        %181 = sbr.rel (%p178) target = $region36
      $region35: #{tpu_custom_call.1} parent=5 // pred_region
        %s182 = ssub.s32 %s13, 1
        %s183 = smul.u32 64, %s18
        %p184 = scmp.lt.s32.totalorder %s183, 127
        %s185 = scalar_select %p184, %s183, 127
        %s186 = smul.addr %s185, 8
        %s187 = scalar_lea.vmem %s0, %s186
        %p188 = pneg %p39
        %p189 = pneg %p36
        %s190 = smul.u32 64, %s18
        %p191 = scmp.lt.s32.totalorder %s190, 127
        %s192 = scalar_select %p191, %s190, 127
        %s193 = smul.addr %s192, 8
        %s194 = scalar_lea.vmem %s1, %s193
        %p195 = pneg %p65
        %p196 = pneg %p62
        %p197 = pneg %p86
        %p198 = pneg %p83
        %p199 = pneg %p107
        %p200 = pneg %p104
        %p201 = pneg %p133
        %p202 = pneg %p130
        %s203 = sand.u32 %s120, 1
        %s204 = scalar_lea.sflag [#allocation3], %s203
        %s205 = sand.u32 %s120, 1
        %s206 = smul.addr %s205, 512
        %s207 = scalar_lea.vmem [#allocation2], %s206
        %s208 = smul.u32 64, %s18
        %p209 = scmp.lt.s32.totalorder %s208, 127
        %s210 = scalar_select %p209, %s208, 127
        %s211 = smul.addr %s210, 8
        %s212 = scalar_lea.vmem %s0, %s211
        %s213 = smul.u32 64, %s18
        %s214 = smul.u32 64, %s18
        %p215 = scmp.lt.s32.totalorder %s214, 127
        %s216 = scalar_select %p215, %s214, 127
        %s217 = smul.addr %s216, 8
        %s218 = scalar_lea.vmem %s1, %s217
        %s219 = smul.u32 64, %s18
        %s220 = smul.u32 64, %s18
        %v221 = vlaneseq
        %v222 = vand.u32 %v221, 127
        %v223 = vld [vmem:[%s212] sm:$0xff]
        %v224 = vld [vmem:[%s212 + $0x8] sm:$0xff]
        %v225 = vld [vmem:[%s212 + $0x10] sm:$0xff]
        %v226 = vld [vmem:[%s212 + $0x18] sm:$0xff]
        %v227 = vld [vmem:[%s212 + $0x20] sm:$0xff]
        %v228 = vld [vmem:[%s212 + $0x28] sm:$0xff]
        %v229 = vld [vmem:[%s212 + $0x30] sm:$0xff]
        %v230 = vld [vmem:[%s212 + $0x38] sm:$0xff]
        %v231 = vld [vmem:[%s212 + $0x40] sm:$0xff]
        %v232 = vld [vmem:[%s212 + $0x48] sm:$0xff]
        %v233 = vld [vmem:[%s212 + $0x50] sm:$0xff]
        %v234 = vld [vmem:[%s212 + $0x58] sm:$0xff]
        %v235 = vld [vmem:[%s212 + $0x60] sm:$0xff]
        %v236 = vld [vmem:[%s212 + $0x68] sm:$0xff]
        %v237 = vld [vmem:[%s212 + $0x70] sm:$0xff]
        %v238 = vld [vmem:[%s212 + $0x78] sm:$0xff]
        %v239 = vld [vmem:[%s212 + $0x80] sm:$0xff]
        %v240 = vld [vmem:[%s212 + $0x88] sm:$0xff]
        %v241 = vld [vmem:[%s212 + $0x90] sm:$0xff]
        %v242 = vld [vmem:[%s212 + $0x98] sm:$0xff]
        %v243 = vld [vmem:[%s212 + $0xa0] sm:$0xff]
        %v244 = vld [vmem:[%s212 + $0xa8] sm:$0xff]
        %v245 = vld [vmem:[%s212 + $0xb0] sm:$0xff]
        %v246 = vld [vmem:[%s212 + $0xb8] sm:$0xff]
        %v247 = vld [vmem:[%s212 + $0xc0] sm:$0xff]
        %v248 = vld [vmem:[%s212 + $0xc8] sm:$0xff]
        %v249 = vld [vmem:[%s212 + $0xd0] sm:$0xff]
        %v250 = vld [vmem:[%s212 + $0xd8] sm:$0xff]
        %v251 = vld [vmem:[%s212 + $0xe0] sm:$0xff]
        %v252 = vld [vmem:[%s212 + $0xe8] sm:$0xff]
        %v253 = vld [vmem:[%s212 + $0xf0] sm:$0xff]
        %v254 = vld [vmem:[%s212 + $0xf8] sm:$0xff]
        %v255 = vld [vmem:[%s212 + $0x100] sm:$0xff]
        %v256 = vld [vmem:[%s212 + $0x108] sm:$0xff]
        %v257 = vld [vmem:[%s212 + $0x110] sm:$0xff]
        %v258 = vld [vmem:[%s212 + $0x118] sm:$0xff]
        %v259 = vld [vmem:[%s212 + $0x120] sm:$0xff]
        %v260 = vld [vmem:[%s212 + $0x128] sm:$0xff]
        %v261 = vld [vmem:[%s212 + $0x130] sm:$0xff]
        %v262 = vld [vmem:[%s212 + $0x138] sm:$0xff]
        %v263 = vld [vmem:[%s212 + $0x140] sm:$0xff]
        %v264 = vld [vmem:[%s212 + $0x148] sm:$0xff]
        %v265 = vld [vmem:[%s212 + $0x150] sm:$0xff]
        %v266 = vld [vmem:[%s212 + $0x158] sm:$0xff]
        %v267 = vld [vmem:[%s212 + $0x160] sm:$0xff]
        %v268 = vld [vmem:[%s212 + $0x168] sm:$0xff]
        %v269 = vld [vmem:[%s212 + $0x170] sm:$0xff]
        %v270 = vld [vmem:[%s212 + $0x178] sm:$0xff]
        %v271 = vld [vmem:[%s212 + $0x180] sm:$0xff]
        %v272 = vld [vmem:[%s212 + $0x188] sm:$0xff]
        %v273 = vld [vmem:[%s212 + $0x190] sm:$0xff]
        %v274 = vld [vmem:[%s212 + $0x198] sm:$0xff]
        %v275 = vld [vmem:[%s212 + $0x1a0] sm:$0xff]
        %v276 = vld [vmem:[%s212 + $0x1a8] sm:$0xff]
        %v277 = vld [vmem:[%s212 + $0x1b0] sm:$0xff]
        %v278 = vld [vmem:[%s212 + $0x1b8] sm:$0xff]
        %v279 = vld [vmem:[%s212 + $0x1c0] sm:$0xff]
        %v280 = vld [vmem:[%s212 + $0x1c8] sm:$0xff]
        %v281 = vld [vmem:[%s212 + $0x1d0] sm:$0xff]
        %v282 = vld [vmem:[%s212 + $0x1d8] sm:$0xff]
        %v283 = vld [vmem:[%s212 + $0x1e0] sm:$0xff]
        %v284 = vld [vmem:[%s212 + $0x1e8] sm:$0xff]
        %v285 = vld [vmem:[%s212 + $0x1f0] sm:$0xff]
        %v286 = vld [vmem:[%s212 + $0x1f8] sm:$0xff]
        %vm287 = vcmp.eq.s32.totalorder %v222, 19
        %288 = vset.pattern.permute.xlu0 0
        %289 = vperm.xlu0 %288, %v223
        %v290 = vpop.permute.xlu0 %289
        %291 = vset.pattern.permute.xlu0 0
        %292 = vperm.xlu0 %291, %v224
        %v293 = vpop.permute.xlu0 %292
        %294 = vset.pattern.permute.xlu0 0
        %295 = vperm.xlu0 %294, %v225
        %v296 = vpop.permute.xlu0 %295
        %297 = vset.pattern.permute.xlu0 0
        %298 = vperm.xlu0 %297, %v226
        %v299 = vpop.permute.xlu0 %298
        %300 = vset.pattern.permute.xlu0 0
        %301 = vperm.xlu0 %300, %v227
        %v302 = vpop.permute.xlu0 %301
        %303 = vset.pattern.permute.xlu0 0
        %304 = vperm.xlu0 %303, %v228
        %v305 = vpop.permute.xlu0 %304
        %306 = vset.pattern.permute.xlu0 0
        %307 = vperm.xlu0 %306, %v229
        %v308 = vpop.permute.xlu0 %307
        %309 = vset.pattern.permute.xlu0 0
        %310 = vperm.xlu0 %309, %v230
        %v311 = vpop.permute.xlu0 %310
        %312 = vset.pattern.permute.xlu0 0
        %313 = vperm.xlu0 %312, %v231
        %v314 = vpop.permute.xlu0 %313
        %315 = vset.pattern.permute.xlu0 0
        %316 = vperm.xlu0 %315, %v232
        %v317 = vpop.permute.xlu0 %316
        %318 = vset.pattern.permute.xlu0 0
        %319 = vperm.xlu0 %318, %v233
        %v320 = vpop.permute.xlu0 %319
        %321 = vset.pattern.permute.xlu0 0
        %322 = vperm.xlu0 %321, %v234
        %v323 = vpop.permute.xlu0 %322
        %324 = vset.pattern.permute.xlu0 0
        %325 = vperm.xlu0 %324, %v235
        %v326 = vpop.permute.xlu0 %325
        %327 = vset.pattern.permute.xlu0 0
        %328 = vperm.xlu0 %327, %v236
        %v329 = vpop.permute.xlu0 %328
        %330 = vset.pattern.permute.xlu0 0
        %331 = vperm.xlu0 %330, %v237
        %v332 = vpop.permute.xlu0 %331
        %333 = vset.pattern.permute.xlu0 0
        %334 = vperm.xlu0 %333, %v238
        %v335 = vpop.permute.xlu0 %334
        %336 = vset.pattern.permute.xlu0 0
        %337 = vperm.xlu0 %336, %v239
        %v338 = vpop.permute.xlu0 %337
        %339 = vset.pattern.permute.xlu0 0
        %340 = vperm.xlu0 %339, %v240
        %v341 = vpop.permute.xlu0 %340
        %342 = vset.pattern.permute.xlu0 0
        %343 = vperm.xlu0 %342, %v241
        %v344 = vpop.permute.xlu0 %343
        %345 = vset.pattern.permute.xlu0 0
        %346 = vperm.xlu0 %345, %v242
        %v347 = vpop.permute.xlu0 %346
        %348 = vset.pattern.permute.xlu0 0
        %349 = vperm.xlu0 %348, %v243
        %v350 = vpop.permute.xlu0 %349
        %351 = vset.pattern.permute.xlu0 0
        %352 = vperm.xlu0 %351, %v244
        %v353 = vpop.permute.xlu0 %352
        %354 = vset.pattern.permute.xlu0 0
        %355 = vperm.xlu0 %354, %v245
        %v356 = vpop.permute.xlu0 %355
        %357 = vset.pattern.permute.xlu0 0
        %358 = vperm.xlu0 %357, %v246
        %v359 = vpop.permute.xlu0 %358
        %360 = vset.pattern.permute.xlu0 0
        %361 = vperm.xlu0 %360, %v247
        %v362 = vpop.permute.xlu0 %361
        %363 = vset.pattern.permute.xlu0 0
        %364 = vperm.xlu0 %363, %v248
        %v365 = vpop.permute.xlu0 %364
        %366 = vset.pattern.permute.xlu0 0
        %367 = vperm.xlu0 %366, %v249
        %v368 = vpop.permute.xlu0 %367
        %369 = vset.pattern.permute.xlu0 0
        %370 = vperm.xlu0 %369, %v250
        %v371 = vpop.permute.xlu0 %370
        %372 = vset.pattern.permute.xlu0 0
        %373 = vperm.xlu0 %372, %v251
        %v374 = vpop.permute.xlu0 %373
        %375 = vset.pattern.permute.xlu0 0
        %376 = vperm.xlu0 %375, %v252
        %v377 = vpop.permute.xlu0 %376
        %378 = vset.pattern.permute.xlu0 0
        %379 = vperm.xlu0 %378, %v253
        %v380 = vpop.permute.xlu0 %379
        %381 = vset.pattern.permute.xlu0 0
        %382 = vperm.xlu0 %381, %v254
        %v383 = vpop.permute.xlu0 %382
        %384 = vset.pattern.permute.xlu0 0
        %385 = vperm.xlu0 %384, %v255
        %v386 = vpop.permute.xlu0 %385
        %387 = vset.pattern.permute.xlu0 0
        %388 = vperm.xlu0 %387, %v256
        %v389 = vpop.permute.xlu0 %388
        %390 = vset.pattern.permute.xlu0 0
        %391 = vperm.xlu0 %390, %v257
        %v392 = vpop.permute.xlu0 %391
        %393 = vset.pattern.permute.xlu0 0
        %394 = vperm.xlu0 %393, %v258
        %v395 = vpop.permute.xlu0 %394
        %396 = vset.pattern.permute.xlu0 0
        %397 = vperm.xlu0 %396, %v259
        %v398 = vpop.permute.xlu0 %397
        %399 = vset.pattern.permute.xlu0 0
        %400 = vperm.xlu0 %399, %v260
        %v401 = vpop.permute.xlu0 %400
        %402 = vset.pattern.permute.xlu0 0
        %403 = vperm.xlu0 %402, %v261
        %v404 = vpop.permute.xlu0 %403
        %405 = vset.pattern.permute.xlu0 0
        %406 = vperm.xlu0 %405, %v262
        %v407 = vpop.permute.xlu0 %406
        %408 = vset.pattern.permute.xlu0 0
        %409 = vperm.xlu0 %408, %v263
        %v410 = vpop.permute.xlu0 %409
        %411 = vset.pattern.permute.xlu0 0
        %412 = vperm.xlu0 %411, %v264
        %v413 = vpop.permute.xlu0 %412
        %414 = vset.pattern.permute.xlu0 0
        %415 = vperm.xlu0 %414, %v265
        %v416 = vpop.permute.xlu0 %415
        %417 = vset.pattern.permute.xlu0 0
        %418 = vperm.xlu0 %417, %v266
        %v419 = vpop.permute.xlu0 %418
        %420 = vset.pattern.permute.xlu0 0
        %421 = vperm.xlu0 %420, %v267
        %v422 = vpop.permute.xlu0 %421
        %423 = vset.pattern.permute.xlu0 0
        %424 = vperm.xlu0 %423, %v268
        %v425 = vpop.permute.xlu0 %424
        %426 = vset.pattern.permute.xlu0 0
        %427 = vperm.xlu0 %426, %v269
        %v428 = vpop.permute.xlu0 %427
        %429 = vset.pattern.permute.xlu0 0
        %430 = vperm.xlu0 %429, %v270
        %v431 = vpop.permute.xlu0 %430
        %432 = vset.pattern.permute.xlu0 0
        %433 = vperm.xlu0 %432, %v271
        %v434 = vpop.permute.xlu0 %433
        %435 = vset.pattern.permute.xlu0 0
        %436 = vperm.xlu0 %435, %v272
        %v437 = vpop.permute.xlu0 %436
        %438 = vset.pattern.permute.xlu0 0
        %439 = vperm.xlu0 %438, %v273
        %v440 = vpop.permute.xlu0 %439
        %441 = vset.pattern.permute.xlu0 0
        %442 = vperm.xlu0 %441, %v274
        %v443 = vpop.permute.xlu0 %442
        %444 = vset.pattern.permute.xlu0 0
        %445 = vperm.xlu0 %444, %v275
        %v446 = vpop.permute.xlu0 %445
        %447 = vset.pattern.permute.xlu0 0
        %448 = vperm.xlu0 %447, %v276
        %v449 = vpop.permute.xlu0 %448
        %450 = vset.pattern.permute.xlu0 0
        %451 = vperm.xlu0 %450, %v277
        %v452 = vpop.permute.xlu0 %451
        %453 = vset.pattern.permute.xlu0 0
        %454 = vperm.xlu0 %453, %v278
        %v455 = vpop.permute.xlu0 %454
        %456 = vset.pattern.permute.xlu0 0
        %457 = vperm.xlu0 %456, %v279
        %v458 = vpop.permute.xlu0 %457
        %459 = vset.pattern.permute.xlu0 0
        %460 = vperm.xlu0 %459, %v280
        %v461 = vpop.permute.xlu0 %460
        %462 = vset.pattern.permute.xlu0 0
        %463 = vperm.xlu0 %462, %v281
        %v464 = vpop.permute.xlu0 %463
        %465 = vset.pattern.permute.xlu0 0
        %466 = vperm.xlu0 %465, %v282
        %v467 = vpop.permute.xlu0 %466
        %468 = vset.pattern.permute.xlu0 0
        %469 = vperm.xlu0 %468, %v283
        %v470 = vpop.permute.xlu0 %469
        %471 = vset.pattern.permute.xlu0 0
        %472 = vperm.xlu0 %471, %v284
        %v473 = vpop.permute.xlu0 %472
        %474 = vset.pattern.permute.xlu0 0
        %475 = vperm.xlu0 %474, %v285
        %v476 = vpop.permute.xlu0 %475
        %477 = vset.pattern.permute.xlu0 0
        %478 = vperm.xlu0 %477, %v286
        %v479 = vpop.permute.xlu0 %478
        %vm480 = vcmp.eq.s32.totalorder %v222, %v290
        %vm481 = vcmp.eq.s32.totalorder %v222, %v293
        %vm482 = vcmp.eq.s32.totalorder %v222, %v296
        %vm483 = vcmp.eq.s32.totalorder %v222, %v299
        %vm484 = vcmp.eq.s32.totalorder %v222, %v302
        %vm485 = vcmp.eq.s32.totalorder %v222, %v305
        %vm486 = vcmp.eq.s32.totalorder %v222, %v308
        %vm487 = vcmp.eq.s32.totalorder %v222, %v311
        %vm488 = vcmp.eq.s32.totalorder %v222, %v314
        %vm489 = vcmp.eq.s32.totalorder %v222, %v317
        %vm490 = vcmp.eq.s32.totalorder %v222, %v320
        %vm491 = vcmp.eq.s32.totalorder %v222, %v323
        %vm492 = vcmp.eq.s32.totalorder %v222, %v326
        %vm493 = vcmp.eq.s32.totalorder %v222, %v329
        %vm494 = vcmp.eq.s32.totalorder %v222, %v332
        %vm495 = vcmp.eq.s32.totalorder %v222, %v335
        %vm496 = vcmp.eq.s32.totalorder %v222, %v338
        %vm497 = vcmp.eq.s32.totalorder %v222, %v341
        %vm498 = vcmp.eq.s32.totalorder %v222, %v344
        %vm499 = vcmp.eq.s32.totalorder %v222, %v347
        %vm500 = vcmp.eq.s32.totalorder %v222, %v350
        %vm501 = vcmp.eq.s32.totalorder %v222, %v353
        %vm502 = vcmp.eq.s32.totalorder %v222, %v356
        %vm503 = vcmp.eq.s32.totalorder %v222, %v359
        %vm504 = vcmp.eq.s32.totalorder %v222, %v362
        %vm505 = vcmp.eq.s32.totalorder %v222, %v365
        %vm506 = vcmp.eq.s32.totalorder %v222, %v368
        %vm507 = vcmp.eq.s32.totalorder %v222, %v371
        %vm508 = vcmp.eq.s32.totalorder %v222, %v374
        %vm509 = vcmp.eq.s32.totalorder %v222, %v377
        %vm510 = vcmp.eq.s32.totalorder %v222, %v380
        %vm511 = vcmp.eq.s32.totalorder %v222, %v383
        %vm512 = vcmp.eq.s32.totalorder %v222, %v386
        %vm513 = vcmp.eq.s32.totalorder %v222, %v389
        %vm514 = vcmp.eq.s32.totalorder %v222, %v392
        %vm515 = vcmp.eq.s32.totalorder %v222, %v395
        %vm516 = vcmp.eq.s32.totalorder %v222, %v398
        %vm517 = vcmp.eq.s32.totalorder %v222, %v401
        %vm518 = vcmp.eq.s32.totalorder %v222, %v404
        %vm519 = vcmp.eq.s32.totalorder %v222, %v407
        %vm520 = vcmp.eq.s32.totalorder %v222, %v410
        %vm521 = vcmp.eq.s32.totalorder %v222, %v413
        %vm522 = vcmp.eq.s32.totalorder %v222, %v416
        %vm523 = vcmp.eq.s32.totalorder %v222, %v419
        %vm524 = vcmp.eq.s32.totalorder %v222, %v422
        %vm525 = vcmp.eq.s32.totalorder %v222, %v425
        %vm526 = vcmp.eq.s32.totalorder %v222, %v428
        %vm527 = vcmp.eq.s32.totalorder %v222, %v431
        %vm528 = vcmp.eq.s32.totalorder %v222, %v434
        %vm529 = vcmp.eq.s32.totalorder %v222, %v437
        %vm530 = vcmp.eq.s32.totalorder %v222, %v440
        %vm531 = vcmp.eq.s32.totalorder %v222, %v443
        %vm532 = vcmp.eq.s32.totalorder %v222, %v446
        %vm533 = vcmp.eq.s32.totalorder %v222, %v449
        %vm534 = vcmp.eq.s32.totalorder %v222, %v452
        %vm535 = vcmp.eq.s32.totalorder %v222, %v455
        %vm536 = vcmp.eq.s32.totalorder %v222, %v458
        %vm537 = vcmp.eq.s32.totalorder %v222, %v461
        %vm538 = vcmp.eq.s32.totalorder %v222, %v464
        %vm539 = vcmp.eq.s32.totalorder %v222, %v467
        %vm540 = vcmp.eq.s32.totalorder %v222, %v470
        %vm541 = vcmp.eq.s32.totalorder %v222, %v473
        %vm542 = vcmp.eq.s32.totalorder %v222, %v476
        %vm543 = vcmp.eq.s32.totalorder %v222, %v479
        %544 = vset.pattern.permute.xlu0 1
        %545 = vperm.xlu0 %544, %v223
        %v546 = vpop.permute.xlu0 %545
        %547 = vset.pattern.permute.xlu0 1
        %548 = vperm.xlu0 %547, %v224
        %v549 = vpop.permute.xlu0 %548
        %550 = vset.pattern.permute.xlu0 1
        %551 = vperm.xlu0 %550, %v225
        %v552 = vpop.permute.xlu0 %551
        %553 = vset.pattern.permute.xlu0 1
        %554 = vperm.xlu0 %553, %v226
        %v555 = vpop.permute.xlu0 %554
        %556 = vset.pattern.permute.xlu0 1
        %557 = vperm.xlu0 %556, %v227
        %v558 = vpop.permute.xlu0 %557
        %559 = vset.pattern.permute.xlu0 1
        %560 = vperm.xlu0 %559, %v228
        %v561 = vpop.permute.xlu0 %560
        %562 = vset.pattern.permute.xlu0 1
        %563 = vperm.xlu0 %562, %v229
        %v564 = vpop.permute.xlu0 %563
        %565 = vset.pattern.permute.xlu0 1
        %566 = vperm.xlu0 %565, %v230
        %v567 = vpop.permute.xlu0 %566
        %568 = vset.pattern.permute.xlu0 1
        %569 = vperm.xlu0 %568, %v231
        %v570 = vpop.permute.xlu0 %569
        %571 = vset.pattern.permute.xlu0 1
        %572 = vperm.xlu0 %571, %v232
        %v573 = vpop.permute.xlu0 %572
        %574 = vset.pattern.permute.xlu0 1
        %575 = vperm.xlu0 %574, %v233
        %v576 = vpop.permute.xlu0 %575
        %577 = vset.pattern.permute.xlu0 1
        %578 = vperm.xlu0 %577, %v234
        %v579 = vpop.permute.xlu0 %578
        %580 = vset.pattern.permute.xlu0 1
        %581 = vperm.xlu0 %580, %v235
        %v582 = vpop.permute.xlu0 %581
        %583 = vset.pattern.permute.xlu0 1
        %584 = vperm.xlu0 %583, %v236
        %v585 = vpop.permute.xlu0 %584
        %586 = vset.pattern.permute.xlu0 1
        %587 = vperm.xlu0 %586, %v237
        %v588 = vpop.permute.xlu0 %587
        %589 = vset.pattern.permute.xlu0 1
        %590 = vperm.xlu0 %589, %v238
        %v591 = vpop.permute.xlu0 %590
        %592 = vset.pattern.permute.xlu0 1
        %593 = vperm.xlu0 %592, %v239
        %v594 = vpop.permute.xlu0 %593
        %595 = vset.pattern.permute.xlu0 1
        %596 = vperm.xlu0 %595, %v240
        %v597 = vpop.permute.xlu0 %596
        %598 = vset.pattern.permute.xlu0 1
        %599 = vperm.xlu0 %598, %v241
        %v600 = vpop.permute.xlu0 %599
        %601 = vset.pattern.permute.xlu0 1
        %602 = vperm.xlu0 %601, %v242
        %v603 = vpop.permute.xlu0 %602
        %604 = vset.pattern.permute.xlu0 1
        %605 = vperm.xlu0 %604, %v243
        %v606 = vpop.permute.xlu0 %605
        %607 = vset.pattern.permute.xlu0 1
        %608 = vperm.xlu0 %607, %v244
        %v609 = vpop.permute.xlu0 %608
        %610 = vset.pattern.permute.xlu0 1
        %611 = vperm.xlu0 %610, %v245
        %v612 = vpop.permute.xlu0 %611
        %613 = vset.pattern.permute.xlu0 1
        %614 = vperm.xlu0 %613, %v246
        %v615 = vpop.permute.xlu0 %614
        %616 = vset.pattern.permute.xlu0 1
        %617 = vperm.xlu0 %616, %v247
        %v618 = vpop.permute.xlu0 %617
        %619 = vset.pattern.permute.xlu0 1
        %620 = vperm.xlu0 %619, %v248
        %v621 = vpop.permute.xlu0 %620
        %622 = vset.pattern.permute.xlu0 1
        %623 = vperm.xlu0 %622, %v249
        %v624 = vpop.permute.xlu0 %623
        %625 = vset.pattern.permute.xlu0 1
        %626 = vperm.xlu0 %625, %v250
        %v627 = vpop.permute.xlu0 %626
        %628 = vset.pattern.permute.xlu0 1
        %629 = vperm.xlu0 %628, %v251
        %v630 = vpop.permute.xlu0 %629
        %631 = vset.pattern.permute.xlu0 1
        %632 = vperm.xlu0 %631, %v252
        %v633 = vpop.permute.xlu0 %632
        %634 = vset.pattern.permute.xlu0 1
        %635 = vperm.xlu0 %634, %v253
        %v636 = vpop.permute.xlu0 %635
        %637 = vset.pattern.permute.xlu0 1
        %638 = vperm.xlu0 %637, %v254
        %v639 = vpop.permute.xlu0 %638
        %640 = vset.pattern.permute.xlu0 1
        %641 = vperm.xlu0 %640, %v255
        %v642 = vpop.permute.xlu0 %641
        %643 = vset.pattern.permute.xlu0 1
        %644 = vperm.xlu0 %643, %v256
        %v645 = vpop.permute.xlu0 %644
        %646 = vset.pattern.permute.xlu0 1
        %647 = vperm.xlu0 %646, %v257
        %v648 = vpop.permute.xlu0 %647
        %649 = vset.pattern.permute.xlu0 1
        %650 = vperm.xlu0 %649, %v258
        %v651 = vpop.permute.xlu0 %650
        %652 = vset.pattern.permute.xlu0 1
        %653 = vperm.xlu0 %652, %v259
        %v654 = vpop.permute.xlu0 %653
        %655 = vset.pattern.permute.xlu0 1
        %656 = vperm.xlu0 %655, %v260
        %v657 = vpop.permute.xlu0 %656
        %658 = vset.pattern.permute.xlu0 1
        %659 = vperm.xlu0 %658, %v261
        %v660 = vpop.permute.xlu0 %659
        %661 = vset.pattern.permute.xlu0 1
        %662 = vperm.xlu0 %661, %v262
        %v663 = vpop.permute.xlu0 %662
        %664 = vset.pattern.permute.xlu0 1
        %665 = vperm.xlu0 %664, %v263
        %v666 = vpop.permute.xlu0 %665
        %667 = vset.pattern.permute.xlu0 1
        %668 = vperm.xlu0 %667, %v264
        %v669 = vpop.permute.xlu0 %668
        %670 = vset.pattern.permute.xlu0 1
        %671 = vperm.xlu0 %670, %v265
        %v672 = vpop.permute.xlu0 %671
        %673 = vset.pattern.permute.xlu0 1
        %674 = vperm.xlu0 %673, %v266
        %v675 = vpop.permute.xlu0 %674
        %676 = vset.pattern.permute.xlu0 1
        %677 = vperm.xlu0 %676, %v267
        %v678 = vpop.permute.xlu0 %677
        %679 = vset.pattern.permute.xlu0 1
        %680 = vperm.xlu0 %679, %v268
        %v681 = vpop.permute.xlu0 %680
        %682 = vset.pattern.permute.xlu0 1
        %683 = vperm.xlu0 %682, %v269
        %v684 = vpop.permute.xlu0 %683
        %685 = vset.pattern.permute.xlu0 1
        %686 = vperm.xlu0 %685, %v270
        %v687 = vpop.permute.xlu0 %686
        %688 = vset.pattern.permute.xlu0 1
        %689 = vperm.xlu0 %688, %v271
        %v690 = vpop.permute.xlu0 %689
        %691 = vset.pattern.permute.xlu0 1
        %692 = vperm.xlu0 %691, %v272
        %v693 = vpop.permute.xlu0 %692
        %694 = vset.pattern.permute.xlu0 1
        %695 = vperm.xlu0 %694, %v273
        %v696 = vpop.permute.xlu0 %695
        %697 = vset.pattern.permute.xlu0 1
        %698 = vperm.xlu0 %697, %v274
        %v699 = vpop.permute.xlu0 %698
        %700 = vset.pattern.permute.xlu0 1
        %701 = vperm.xlu0 %700, %v275
        %v702 = vpop.permute.xlu0 %701
        %703 = vset.pattern.permute.xlu0 1
        %704 = vperm.xlu0 %703, %v276
        %v705 = vpop.permute.xlu0 %704
        %706 = vset.pattern.permute.xlu0 1
        %707 = vperm.xlu0 %706, %v277
        %v708 = vpop.permute.xlu0 %707
        %709 = vset.pattern.permute.xlu0 1
        %710 = vperm.xlu0 %709, %v278
        %v711 = vpop.permute.xlu0 %710
        %712 = vset.pattern.permute.xlu0 1
        %713 = vperm.xlu0 %712, %v279
        %v714 = vpop.permute.xlu0 %713
        %715 = vset.pattern.permute.xlu0 1
        %716 = vperm.xlu0 %715, %v280
        %v717 = vpop.permute.xlu0 %716
        %718 = vset.pattern.permute.xlu0 1
        %719 = vperm.xlu0 %718, %v281
        %v720 = vpop.permute.xlu0 %719
        %721 = vset.pattern.permute.xlu0 1
        %722 = vperm.xlu0 %721, %v282
        %v723 = vpop.permute.xlu0 %722
        %724 = vset.pattern.permute.xlu0 1
        %725 = vperm.xlu0 %724, %v283
        %v726 = vpop.permute.xlu0 %725
        %727 = vset.pattern.permute.xlu0 1
        %728 = vperm.xlu0 %727, %v284
        %v729 = vpop.permute.xlu0 %728
        %730 = vset.pattern.permute.xlu0 1
        %731 = vperm.xlu0 %730, %v285
        %v732 = vpop.permute.xlu0 %731
        %733 = vset.pattern.permute.xlu0 1
        %734 = vperm.xlu0 %733, %v286
        %v735 = vpop.permute.xlu0 %734
        %vm736 = vcmp.eq.s32.totalorder %v222, %v546
        %vm737 = vcmp.eq.s32.totalorder %v222, %v549
        %vm738 = vcmp.eq.s32.totalorder %v222, %v552
        %vm739 = vcmp.eq.s32.totalorder %v222, %v555
        %vm740 = vcmp.eq.s32.totalorder %v222, %v558
        %vm741 = vcmp.eq.s32.totalorder %v222, %v561
        %vm742 = vcmp.eq.s32.totalorder %v222, %v564
        %vm743 = vcmp.eq.s32.totalorder %v222, %v567
        %vm744 = vcmp.eq.s32.totalorder %v222, %v570
        %vm745 = vcmp.eq.s32.totalorder %v222, %v573
        %vm746 = vcmp.eq.s32.totalorder %v222, %v576
        %vm747 = vcmp.eq.s32.totalorder %v222, %v579
        %vm748 = vcmp.eq.s32.totalorder %v222, %v582
        %vm749 = vcmp.eq.s32.totalorder %v222, %v585
        %vm750 = vcmp.eq.s32.totalorder %v222, %v588
        %vm751 = vcmp.eq.s32.totalorder %v222, %v591
        %vm752 = vcmp.eq.s32.totalorder %v222, %v594
        %vm753 = vcmp.eq.s32.totalorder %v222, %v597
        %vm754 = vcmp.eq.s32.totalorder %v222, %v600
        %vm755 = vcmp.eq.s32.totalorder %v222, %v603
        %vm756 = vcmp.eq.s32.totalorder %v222, %v606
        %vm757 = vcmp.eq.s32.totalorder %v222, %v609
        %vm758 = vcmp.eq.s32.totalorder %v222, %v612
        %vm759 = vcmp.eq.s32.totalorder %v222, %v615
        %vm760 = vcmp.eq.s32.totalorder %v222, %v618
        %vm761 = vcmp.eq.s32.totalorder %v222, %v621
        %vm762 = vcmp.eq.s32.totalorder %v222, %v624
        %vm763 = vcmp.eq.s32.totalorder %v222, %v627
        %vm764 = vcmp.eq.s32.totalorder %v222, %v630
        %vm765 = vcmp.eq.s32.totalorder %v222, %v633
        %vm766 = vcmp.eq.s32.totalorder %v222, %v636
        %vm767 = vcmp.eq.s32.totalorder %v222, %v639
        %vm768 = vcmp.eq.s32.totalorder %v222, %v642
        %vm769 = vcmp.eq.s32.totalorder %v222, %v645
        %vm770 = vcmp.eq.s32.totalorder %v222, %v648
        %vm771 = vcmp.eq.s32.totalorder %v222, %v651
        %vm772 = vcmp.eq.s32.totalorder %v222, %v654
        %vm773 = vcmp.eq.s32.totalorder %v222, %v657
        %vm774 = vcmp.eq.s32.totalorder %v222, %v660
        %vm775 = vcmp.eq.s32.totalorder %v222, %v663
        %vm776 = vcmp.eq.s32.totalorder %v222, %v666
        %vm777 = vcmp.eq.s32.totalorder %v222, %v669
        %vm778 = vcmp.eq.s32.totalorder %v222, %v672
        %vm779 = vcmp.eq.s32.totalorder %v222, %v675
        %vm780 = vcmp.eq.s32.totalorder %v222, %v678
        %vm781 = vcmp.eq.s32.totalorder %v222, %v681
        %vm782 = vcmp.eq.s32.totalorder %v222, %v684
        %vm783 = vcmp.eq.s32.totalorder %v222, %v687
        %vm784 = vcmp.eq.s32.totalorder %v222, %v690
        %vm785 = vcmp.eq.s32.totalorder %v222, %v693
        %vm786 = vcmp.eq.s32.totalorder %v222, %v696
        %vm787 = vcmp.eq.s32.totalorder %v222, %v699
        %vm788 = vcmp.eq.s32.totalorder %v222, %v702
        %vm789 = vcmp.eq.s32.totalorder %v222, %v705
        %vm790 = vcmp.eq.s32.totalorder %v222, %v708
        %vm791 = vcmp.eq.s32.totalorder %v222, %v711
        %vm792 = vcmp.eq.s32.totalorder %v222, %v714
        %vm793 = vcmp.eq.s32.totalorder %v222, %v717
        %vm794 = vcmp.eq.s32.totalorder %v222, %v720
        %vm795 = vcmp.eq.s32.totalorder %v222, %v723
        %vm796 = vcmp.eq.s32.totalorder %v222, %v726
        %vm797 = vcmp.eq.s32.totalorder %v222, %v729
        %vm798 = vcmp.eq.s32.totalorder %v222, %v732
        %vm799 = vcmp.eq.s32.totalorder %v222, %v735
        %800 = vset.pattern.permute.xlu0 2
        %801 = vperm.xlu0 %800, %v223
        %v802 = vpop.permute.xlu0 %801
        %803 = vset.pattern.permute.xlu0 2
        %804 = vperm.xlu0 %803, %v224
        %v805 = vpop.permute.xlu0 %804
        %806 = vset.pattern.permute.xlu0 2
        %807 = vperm.xlu0 %806, %v225
        %v808 = vpop.permute.xlu0 %807
        %809 = vset.pattern.permute.xlu0 2
        %810 = vperm.xlu0 %809, %v226
        %v811 = vpop.permute.xlu0 %810
        %812 = vset.pattern.permute.xlu0 2
        %813 = vperm.xlu0 %812, %v227
        %v814 = vpop.permute.xlu0 %813
        %815 = vset.pattern.permute.xlu0 2
        %816 = vperm.xlu0 %815, %v228
        %v817 = vpop.permute.xlu0 %816
        %818 = vset.pattern.permute.xlu0 2
        %819 = vperm.xlu0 %818, %v229
        %v820 = vpop.permute.xlu0 %819
        %821 = vset.pattern.permute.xlu0 2
        %822 = vperm.xlu0 %821, %v230
        %v823 = vpop.permute.xlu0 %822
        %824 = vset.pattern.permute.xlu0 2
        %825 = vperm.xlu0 %824, %v231
        %v826 = vpop.permute.xlu0 %825
        %827 = vset.pattern.permute.xlu0 2
        %828 = vperm.xlu0 %827, %v232
        %v829 = vpop.permute.xlu0 %828
        %830 = vset.pattern.permute.xlu0 2
        %831 = vperm.xlu0 %830, %v233
        %v832 = vpop.permute.xlu0 %831
        %833 = vset.pattern.permute.xlu0 2
        %834 = vperm.xlu0 %833, %v234
        %v835 = vpop.permute.xlu0 %834
        %836 = vset.pattern.permute.xlu0 2
        %837 = vperm.xlu0 %836, %v235
        %v838 = vpop.permute.xlu0 %837
        %839 = vset.pattern.permute.xlu0 2
        %840 = vperm.xlu0 %839, %v236
        %v841 = vpop.permute.xlu0 %840
        %842 = vset.pattern.permute.xlu0 2
        %843 = vperm.xlu0 %842, %v237
        %v844 = vpop.permute.xlu0 %843
        %845 = vset.pattern.permute.xlu0 2
        %846 = vperm.xlu0 %845, %v238
        %v847 = vpop.permute.xlu0 %846
        %848 = vset.pattern.permute.xlu0 2
        %849 = vperm.xlu0 %848, %v239
        %v850 = vpop.permute.xlu0 %849
        %851 = vset.pattern.permute.xlu0 2
        %852 = vperm.xlu0 %851, %v240
        %v853 = vpop.permute.xlu0 %852
        %854 = vset.pattern.permute.xlu0 2
        %855 = vperm.xlu0 %854, %v241
        %v856 = vpop.permute.xlu0 %855
        %857 = vset.pattern.permute.xlu0 2
        %858 = vperm.xlu0 %857, %v242
        %v859 = vpop.permute.xlu0 %858
        %860 = vset.pattern.permute.xlu0 2
        %861 = vperm.xlu0 %860, %v243
        %v862 = vpop.permute.xlu0 %861
        %863 = vset.pattern.permute.xlu0 2
        %864 = vperm.xlu0 %863, %v244
        %v865 = vpop.permute.xlu0 %864
        %866 = vset.pattern.permute.xlu0 2
        %867 = vperm.xlu0 %866, %v245
        %v868 = vpop.permute.xlu0 %867
        %869 = vset.pattern.permute.xlu0 2
        %870 = vperm.xlu0 %869, %v246
        %v871 = vpop.permute.xlu0 %870
        %872 = vset.pattern.permute.xlu0 2
        %873 = vperm.xlu0 %872, %v247
        %v874 = vpop.permute.xlu0 %873
        %875 = vset.pattern.permute.xlu0 2
        %876 = vperm.xlu0 %875, %v248
        %v877 = vpop.permute.xlu0 %876
        %878 = vset.pattern.permute.xlu0 2
        %879 = vperm.xlu0 %878, %v249
        %v880 = vpop.permute.xlu0 %879
        %881 = vset.pattern.permute.xlu0 2
        %882 = vperm.xlu0 %881, %v250
        %v883 = vpop.permute.xlu0 %882
        %884 = vset.pattern.permute.xlu0 2
        %885 = vperm.xlu0 %884, %v251
        %v886 = vpop.permute.xlu0 %885
        %887 = vset.pattern.permute.xlu0 2
        %888 = vperm.xlu0 %887, %v252
        %v889 = vpop.permute.xlu0 %888
        %890 = vset.pattern.permute.xlu0 2
        %891 = vperm.xlu0 %890, %v253
        %v892 = vpop.permute.xlu0 %891
        %893 = vset.pattern.permute.xlu0 2
        %894 = vperm.xlu0 %893, %v254
        %v895 = vpop.permute.xlu0 %894
        %896 = vset.pattern.permute.xlu0 2
        %897 = vperm.xlu0 %896, %v255
        %v898 = vpop.permute.xlu0 %897
        %899 = vset.pattern.permute.xlu0 2
        %900 = vperm.xlu0 %899, %v256
        %v901 = vpop.permute.xlu0 %900
        %902 = vset.pattern.permute.xlu0 2
        %903 = vperm.xlu0 %902, %v257
        %v904 = vpop.permute.xlu0 %903
        %905 = vset.pattern.permute.xlu0 2
        %906 = vperm.xlu0 %905, %v258
        %v907 = vpop.permute.xlu0 %906
        %908 = vset.pattern.permute.xlu0 2
        %909 = vperm.xlu0 %908, %v259
        %v910 = vpop.permute.xlu0 %909
        %911 = vset.pattern.permute.xlu0 2
        %912 = vperm.xlu0 %911, %v260
        %v913 = vpop.permute.xlu0 %912
        %914 = vset.pattern.permute.xlu0 2
        %915 = vperm.xlu0 %914, %v261
        %v916 = vpop.permute.xlu0 %915
        %917 = vset.pattern.permute.xlu0 2
        %918 = vperm.xlu0 %917, %v262
        %v919 = vpop.permute.xlu0 %918
        %920 = vset.pattern.permute.xlu0 2
        %921 = vperm.xlu0 %920, %v263
        %v922 = vpop.permute.xlu0 %921
        %923 = vset.pattern.permute.xlu0 2
        %924 = vperm.xlu0 %923, %v264
        %v925 = vpop.permute.xlu0 %924
        %926 = vset.pattern.permute.xlu0 2
        %927 = vperm.xlu0 %926, %v265
        %v928 = vpop.permute.xlu0 %927
        %929 = vset.pattern.permute.xlu0 2
        %930 = vperm.xlu0 %929, %v266
        %v931 = vpop.permute.xlu0 %930
        %932 = vset.pattern.permute.xlu0 2
        %933 = vperm.xlu0 %932, %v267
        %v934 = vpop.permute.xlu0 %933
        %935 = vset.pattern.permute.xlu0 2
        %936 = vperm.xlu0 %935, %v268
        %v937 = vpop.permute.xlu0 %936
        %938 = vset.pattern.permute.xlu0 2
        %939 = vperm.xlu0 %938, %v269
        %v940 = vpop.permute.xlu0 %939
        %941 = vset.pattern.permute.xlu0 2
        %942 = vperm.xlu0 %941, %v270
        %v943 = vpop.permute.xlu0 %942
        %944 = vset.pattern.permute.xlu0 2
        %945 = vperm.xlu0 %944, %v271
        %v946 = vpop.permute.xlu0 %945
        %947 = vset.pattern.permute.xlu0 2
        %948 = vperm.xlu0 %947, %v272
        %v949 = vpop.permute.xlu0 %948
        %950 = vset.pattern.permute.xlu0 2
        %951 = vperm.xlu0 %950, %v273
        %v952 = vpop.permute.xlu0 %951
        %953 = vset.pattern.permute.xlu0 2
        %954 = vperm.xlu0 %953, %v274
        %v955 = vpop.permute.xlu0 %954
        %956 = vset.pattern.permute.xlu0 2
        %957 = vperm.xlu0 %956, %v275
        %v958 = vpop.permute.xlu0 %957
        %959 = vset.pattern.permute.xlu0 2
        %960 = vperm.xlu0 %959, %v276
        %v961 = vpop.permute.xlu0 %960
        %962 = vset.pattern.permute.xlu0 2
        %963 = vperm.xlu0 %962, %v277
        %v964 = vpop.permute.xlu0 %963
        %965 = vset.pattern.permute.xlu0 2
        %966 = vperm.xlu0 %965, %v278
        %v967 = vpop.permute.xlu0 %966
        %968 = vset.pattern.permute.xlu0 2
        %969 = vperm.xlu0 %968, %v279
        %v970 = vpop.permute.xlu0 %969
        %971 = vset.pattern.permute.xlu0 2
        %972 = vperm.xlu0 %971, %v280
        %v973 = vpop.permute.xlu0 %972
        %974 = vset.pattern.permute.xlu0 2
        %975 = vperm.xlu0 %974, %v281
        %v976 = vpop.permute.xlu0 %975
        %977 = vset.pattern.permute.xlu0 2
        %978 = vperm.xlu0 %977, %v282
        %v979 = vpop.permute.xlu0 %978
        %980 = vset.pattern.permute.xlu0 2
        %981 = vperm.xlu0 %980, %v283
        %v982 = vpop.permute.xlu0 %981
        %983 = vset.pattern.permute.xlu0 2
        %984 = vperm.xlu0 %983, %v284
        %v985 = vpop.permute.xlu0 %984
        %986 = vset.pattern.permute.xlu0 2
        %987 = vperm.xlu0 %986, %v285
        %v988 = vpop.permute.xlu0 %987
        %989 = vset.pattern.permute.xlu0 2
        %990 = vperm.xlu0 %989, %v286
        %v991 = vpop.permute.xlu0 %990
        %vm992 = vcmp.eq.s32.totalorder %v222, %v802
        %vm993 = vcmp.eq.s32.totalorder %v222, %v805
        %vm994 = vcmp.eq.s32.totalorder %v222, %v808
        %vm995 = vcmp.eq.s32.totalorder %v222, %v811
        %vm996 = vcmp.eq.s32.totalorder %v222, %v814
        %vm997 = vcmp.eq.s32.totalorder %v222, %v817
        %vm998 = vcmp.eq.s32.totalorder %v222, %v820
        %vm999 = vcmp.eq.s32.totalorder %v222, %v823
        %vm1000 = vcmp.eq.s32.totalorder %v222, %v826
        %vm1001 = vcmp.eq.s32.totalorder %v222, %v829
        %vm1002 = vcmp.eq.s32.totalorder %v222, %v832
        %vm1003 = vcmp.eq.s32.totalorder %v222, %v835
        %vm1004 = vcmp.eq.s32.totalorder %v222, %v838
        %vm1005 = vcmp.eq.s32.totalorder %v222, %v841
        %vm1006 = vcmp.eq.s32.totalorder %v222, %v844
        %vm1007 = vcmp.eq.s32.totalorder %v222, %v847
        %vm1008 = vcmp.eq.s32.totalorder %v222, %v850
        %vm1009 = vcmp.eq.s32.totalorder %v222, %v853
        %vm1010 = vcmp.eq.s32.totalorder %v222, %v856
        %vm1011 = vcmp.eq.s32.totalorder %v222, %v859
        %vm1012 = vcmp.eq.s32.totalorder %v222, %v862
        %vm1013 = vcmp.eq.s32.totalorder %v222, %v865
        %vm1014 = vcmp.eq.s32.totalorder %v222, %v868
        %vm1015 = vcmp.eq.s32.totalorder %v222, %v871
        %vm1016 = vcmp.eq.s32.totalorder %v222, %v874
        %vm1017 = vcmp.eq.s32.totalorder %v222, %v877
        %vm1018 = vcmp.eq.s32.totalorder %v222, %v880
        %vm1019 = vcmp.eq.s32.totalorder %v222, %v883
        %vm1020 = vcmp.eq.s32.totalorder %v222, %v886
        %vm1021 = vcmp.eq.s32.totalorder %v222, %v889
        %vm1022 = vcmp.eq.s32.totalorder %v222, %v892
        %vm1023 = vcmp.eq.s32.totalorder %v222, %v895
        %vm1024 = vcmp.eq.s32.totalorder %v222, %v898
        %vm1025 = vcmp.eq.s32.totalorder %v222, %v901
        %vm1026 = vcmp.eq.s32.totalorder %v222, %v904
        %vm1027 = vcmp.eq.s32.totalorder %v222, %v907
        %vm1028 = vcmp.eq.s32.totalorder %v222, %v910
        %vm1029 = vcmp.eq.s32.totalorder %v222, %v913
        %vm1030 = vcmp.eq.s32.totalorder %v222, %v916
        %vm1031 = vcmp.eq.s32.totalorder %v222, %v919
        %vm1032 = vcmp.eq.s32.totalorder %v222, %v922
        %vm1033 = vcmp.eq.s32.totalorder %v222, %v925
        %vm1034 = vcmp.eq.s32.totalorder %v222, %v928
        %vm1035 = vcmp.eq.s32.totalorder %v222, %v931
        %vm1036 = vcmp.eq.s32.totalorder %v222, %v934
        %vm1037 = vcmp.eq.s32.totalorder %v222, %v937
        %vm1038 = vcmp.eq.s32.totalorder %v222, %v940
        %vm1039 = vcmp.eq.s32.totalorder %v222, %v943
        %vm1040 = vcmp.eq.s32.totalorder %v222, %v946
        %vm1041 = vcmp.eq.s32.totalorder %v222, %v949
        %vm1042 = vcmp.eq.s32.totalorder %v222, %v952
        %vm1043 = vcmp.eq.s32.totalorder %v222, %v955
        %vm1044 = vcmp.eq.s32.totalorder %v222, %v958
        %vm1045 = vcmp.eq.s32.totalorder %v222, %v961
        %vm1046 = vcmp.eq.s32.totalorder %v222, %v964
        %vm1047 = vcmp.eq.s32.totalorder %v222, %v967
        %vm1048 = vcmp.eq.s32.totalorder %v222, %v970
        %vm1049 = vcmp.eq.s32.totalorder %v222, %v973
        %vm1050 = vcmp.eq.s32.totalorder %v222, %v976
        %vm1051 = vcmp.eq.s32.totalorder %v222, %v979
        %vm1052 = vcmp.eq.s32.totalorder %v222, %v982
        %vm1053 = vcmp.eq.s32.totalorder %v222, %v985
        %vm1054 = vcmp.eq.s32.totalorder %v222, %v988
        %vm1055 = vcmp.eq.s32.totalorder %v222, %v991
        %1056 = vset.pattern.permute.xlu0 3
        %1057 = vperm.xlu0 %1056, %v223
        %v1058 = vpop.permute.xlu0 %1057
        %1059 = vset.pattern.permute.xlu0 3
        %1060 = vperm.xlu0 %1059, %v224
        %v1061 = vpop.permute.xlu0 %1060
        %1062 = vset.pattern.permute.xlu0 3
        %1063 = vperm.xlu0 %1062, %v225
        %v1064 = vpop.permute.xlu0 %1063
        %1065 = vset.pattern.permute.xlu0 3
        %1066 = vperm.xlu0 %1065, %v226
        %v1067 = vpop.permute.xlu0 %1066
        %1068 = vset.pattern.permute.xlu0 3
        %1069 = vperm.xlu0 %1068, %v227
        %v1070 = vpop.permute.xlu0 %1069
        %1071 = vset.pattern.permute.xlu0 3
        %1072 = vperm.xlu0 %1071, %v228
        %v1073 = vpop.permute.xlu0 %1072
        %1074 = vset.pattern.permute.xlu0 3
        %1075 = vperm.xlu0 %1074, %v229
        %v1076 = vpop.permute.xlu0 %1075
        %1077 = vset.pattern.permute.xlu0 3
        %1078 = vperm.xlu0 %1077, %v230
        %v1079 = vpop.permute.xlu0 %1078
        %1080 = vset.pattern.permute.xlu0 3
        %1081 = vperm.xlu0 %1080, %v231
        %v1082 = vpop.permute.xlu0 %1081
        %1083 = vset.pattern.permute.xlu0 3
        %1084 = vperm.xlu0 %1083, %v232
        %v1085 = vpop.permute.xlu0 %1084
        %1086 = vset.pattern.permute.xlu0 3
        %1087 = vperm.xlu0 %1086, %v233
        %v1088 = vpop.permute.xlu0 %1087
        %1089 = vset.pattern.permute.xlu0 3
        %1090 = vperm.xlu0 %1089, %v234
        %v1091 = vpop.permute.xlu0 %1090
        %1092 = vset.pattern.permute.xlu0 3
        %1093 = vperm.xlu0 %1092, %v235
        %v1094 = vpop.permute.xlu0 %1093
        %1095 = vset.pattern.permute.xlu0 3
        %1096 = vperm.xlu0 %1095, %v236
        %v1097 = vpop.permute.xlu0 %1096
        %1098 = vset.pattern.permute.xlu0 3
        %1099 = vperm.xlu0 %1098, %v237
        %v1100 = vpop.permute.xlu0 %1099
        %1101 = vset.pattern.permute.xlu0 3
        %1102 = vperm.xlu0 %1101, %v238
        %v1103 = vpop.permute.xlu0 %1102
        %1104 = vset.pattern.permute.xlu0 3
        %1105 = vperm.xlu0 %1104, %v239
        %v1106 = vpop.permute.xlu0 %1105
        %1107 = vset.pattern.permute.xlu0 3
        %1108 = vperm.xlu0 %1107, %v240
        %v1109 = vpop.permute.xlu0 %1108
        %1110 = vset.pattern.permute.xlu0 3
        %1111 = vperm.xlu0 %1110, %v241
        %v1112 = vpop.permute.xlu0 %1111
        %1113 = vset.pattern.permute.xlu0 3
        %1114 = vperm.xlu0 %1113, %v242
        %v1115 = vpop.permute.xlu0 %1114
        %1116 = vset.pattern.permute.xlu0 3
        %1117 = vperm.xlu0 %1116, %v243
        %v1118 = vpop.permute.xlu0 %1117
        %1119 = vset.pattern.permute.xlu0 3
        %1120 = vperm.xlu0 %1119, %v244
        %v1121 = vpop.permute.xlu0 %1120
        %1122 = vset.pattern.permute.xlu0 3
        %1123 = vperm.xlu0 %1122, %v245
        %v1124 = vpop.permute.xlu0 %1123
        %1125 = vset.pattern.permute.xlu0 3
        %1126 = vperm.xlu0 %1125, %v246
        %v1127 = vpop.permute.xlu0 %1126
        %1128 = vset.pattern.permute.xlu0 3
        %1129 = vperm.xlu0 %1128, %v247
        %v1130 = vpop.permute.xlu0 %1129
        %1131 = vset.pattern.permute.xlu0 3
        %1132 = vperm.xlu0 %1131, %v248
        %v1133 = vpop.permute.xlu0 %1132
        %1134 = vset.pattern.permute.xlu0 3
        %1135 = vperm.xlu0 %1134, %v249
        %v1136 = vpop.permute.xlu0 %1135
        %1137 = vset.pattern.permute.xlu0 3
        %1138 = vperm.xlu0 %1137, %v250
        %v1139 = vpop.permute.xlu0 %1138
        %1140 = vset.pattern.permute.xlu0 3
        %1141 = vperm.xlu0 %1140, %v251
        %v1142 = vpop.permute.xlu0 %1141
        %1143 = vset.pattern.permute.xlu0 3
        %1144 = vperm.xlu0 %1143, %v252
        %v1145 = vpop.permute.xlu0 %1144
        %1146 = vset.pattern.permute.xlu0 3
        %1147 = vperm.xlu0 %1146, %v253
        %v1148 = vpop.permute.xlu0 %1147
        %1149 = vset.pattern.permute.xlu0 3
        %1150 = vperm.xlu0 %1149, %v254
        %v1151 = vpop.permute.xlu0 %1150
        %1152 = vset.pattern.permute.xlu0 3
        %1153 = vperm.xlu0 %1152, %v255
        %v1154 = vpop.permute.xlu0 %1153
        %1155 = vset.pattern.permute.xlu0 3
        %1156 = vperm.xlu0 %1155, %v256
        %v1157 = vpop.permute.xlu0 %1156
        %1158 = vset.pattern.permute.xlu0 3
        %1159 = vperm.xlu0 %1158, %v257
        %v1160 = vpop.permute.xlu0 %1159
        %1161 = vset.pattern.permute.xlu0 3
        %1162 = vperm.xlu0 %1161, %v258
        %v1163 = vpop.permute.xlu0 %1162
        %1164 = vset.pattern.permute.xlu0 3
        %1165 = vperm.xlu0 %1164, %v259
        %v1166 = vpop.permute.xlu0 %1165
        %1167 = vset.pattern.permute.xlu0 3
        %1168 = vperm.xlu0 %1167, %v260
        %v1169 = vpop.permute.xlu0 %1168
        %1170 = vset.pattern.permute.xlu0 3
        %1171 = vperm.xlu0 %1170, %v261
        %v1172 = vpop.permute.xlu0 %1171
        %1173 = vset.pattern.permute.xlu0 3
        %1174 = vperm.xlu0 %1173, %v262
        %v1175 = vpop.permute.xlu0 %1174
        %1176 = vset.pattern.permute.xlu0 3
        %1177 = vperm.xlu0 %1176, %v263
        %v1178 = vpop.permute.xlu0 %1177
        %1179 = vset.pattern.permute.xlu0 3
        %1180 = vperm.xlu0 %1179, %v264
        %v1181 = vpop.permute.xlu0 %1180
        %1182 = vset.pattern.permute.xlu0 3
        %1183 = vperm.xlu0 %1182, %v265
        %v1184 = vpop.permute.xlu0 %1183
        %1185 = vset.pattern.permute.xlu0 3
        %1186 = vperm.xlu0 %1185, %v266
        %v1187 = vpop.permute.xlu0 %1186
        %1188 = vset.pattern.permute.xlu0 3
        %1189 = vperm.xlu0 %1188, %v267
        %v1190 = vpop.permute.xlu0 %1189
        %1191 = vset.pattern.permute.xlu0 3
        %1192 = vperm.xlu0 %1191, %v268
        %v1193 = vpop.permute.xlu0 %1192
        %1194 = vset.pattern.permute.xlu0 3
        %1195 = vperm.xlu0 %1194, %v269
        %v1196 = vpop.permute.xlu0 %1195
        %1197 = vset.pattern.permute.xlu0 3
        %1198 = vperm.xlu0 %1197, %v270
        %v1199 = vpop.permute.xlu0 %1198
        %1200 = vset.pattern.permute.xlu0 3
        %1201 = vperm.xlu0 %1200, %v271
        %v1202 = vpop.permute.xlu0 %1201
        %1203 = vset.pattern.permute.xlu0 3
        %1204 = vperm.xlu0 %1203, %v272
        %v1205 = vpop.permute.xlu0 %1204
        %1206 = vset.pattern.permute.xlu0 3
        %1207 = vperm.xlu0 %1206, %v273
        %v1208 = vpop.permute.xlu0 %1207
        %1209 = vset.pattern.permute.xlu0 3
        %1210 = vperm.xlu0 %1209, %v274
        %v1211 = vpop.permute.xlu0 %1210
        %1212 = vset.pattern.permute.xlu0 3
        %1213 = vperm.xlu0 %1212, %v275
        %v1214 = vpop.permute.xlu0 %1213
        %1215 = vset.pattern.permute.xlu0 3
        %1216 = vperm.xlu0 %1215, %v276
        %v1217 = vpop.permute.xlu0 %1216
        %1218 = vset.pattern.permute.xlu0 3
        %1219 = vperm.xlu0 %1218, %v277
        %v1220 = vpop.permute.xlu0 %1219
        %1221 = vset.pattern.permute.xlu0 3
        %1222 = vperm.xlu0 %1221, %v278
        %v1223 = vpop.permute.xlu0 %1222
        %1224 = vset.pattern.permute.xlu0 3
        %1225 = vperm.xlu0 %1224, %v279
        %v1226 = vpop.permute.xlu0 %1225
        %1227 = vset.pattern.permute.xlu0 3
        %1228 = vperm.xlu0 %1227, %v280
        %v1229 = vpop.permute.xlu0 %1228
        %1230 = vset.pattern.permute.xlu0 3
        %1231 = vperm.xlu0 %1230, %v281
        %v1232 = vpop.permute.xlu0 %1231
        %1233 = vset.pattern.permute.xlu0 3
        %1234 = vperm.xlu0 %1233, %v282
        %v1235 = vpop.permute.xlu0 %1234
        %1236 = vset.pattern.permute.xlu0 3
        %1237 = vperm.xlu0 %1236, %v283
        %v1238 = vpop.permute.xlu0 %1237
        %1239 = vset.pattern.permute.xlu0 3
        %1240 = vperm.xlu0 %1239, %v284
        %v1241 = vpop.permute.xlu0 %1240
        %1242 = vset.pattern.permute.xlu0 3
        %1243 = vperm.xlu0 %1242, %v285
        %v1244 = vpop.permute.xlu0 %1243
        %1245 = vset.pattern.permute.xlu0 3
        %1246 = vperm.xlu0 %1245, %v286
        %v1247 = vpop.permute.xlu0 %1246
        %vm1248 = vcmp.eq.s32.totalorder %v222, %v1058
        %vm1249 = vcmp.eq.s32.totalorder %v222, %v1061
        %vm1250 = vcmp.eq.s32.totalorder %v222, %v1064
        %vm1251 = vcmp.eq.s32.totalorder %v222, %v1067
        %vm1252 = vcmp.eq.s32.totalorder %v222, %v1070
        %vm1253 = vcmp.eq.s32.totalorder %v222, %v1073
        %vm1254 = vcmp.eq.s32.totalorder %v222, %v1076
        %vm1255 = vcmp.eq.s32.totalorder %v222, %v1079
        %vm1256 = vcmp.eq.s32.totalorder %v222, %v1082
        %vm1257 = vcmp.eq.s32.totalorder %v222, %v1085
        %vm1258 = vcmp.eq.s32.totalorder %v222, %v1088
        %vm1259 = vcmp.eq.s32.totalorder %v222, %v1091
        %vm1260 = vcmp.eq.s32.totalorder %v222, %v1094
        %vm1261 = vcmp.eq.s32.totalorder %v222, %v1097
        %vm1262 = vcmp.eq.s32.totalorder %v222, %v1100
        %vm1263 = vcmp.eq.s32.totalorder %v222, %v1103
        %vm1264 = vcmp.eq.s32.totalorder %v222, %v1106
        %vm1265 = vcmp.eq.s32.totalorder %v222, %v1109
        %vm1266 = vcmp.eq.s32.totalorder %v222, %v1112
        %vm1267 = vcmp.eq.s32.totalorder %v222, %v1115
        %vm1268 = vcmp.eq.s32.totalorder %v222, %v1118
        %vm1269 = vcmp.eq.s32.totalorder %v222, %v1121
        %vm1270 = vcmp.eq.s32.totalorder %v222, %v1124
        %vm1271 = vcmp.eq.s32.totalorder %v222, %v1127
        %vm1272 = vcmp.eq.s32.totalorder %v222, %v1130
        %vm1273 = vcmp.eq.s32.totalorder %v222, %v1133
        %vm1274 = vcmp.eq.s32.totalorder %v222, %v1136
        %vm1275 = vcmp.eq.s32.totalorder %v222, %v1139
        %vm1276 = vcmp.eq.s32.totalorder %v222, %v1142
        %vm1277 = vcmp.eq.s32.totalorder %v222, %v1145
        %vm1278 = vcmp.eq.s32.totalorder %v222, %v1148
        %vm1279 = vcmp.eq.s32.totalorder %v222, %v1151
        %vm1280 = vcmp.eq.s32.totalorder %v222, %v1154
        %vm1281 = vcmp.eq.s32.totalorder %v222, %v1157
        %vm1282 = vcmp.eq.s32.totalorder %v222, %v1160
        %vm1283 = vcmp.eq.s32.totalorder %v222, %v1163
        %vm1284 = vcmp.eq.s32.totalorder %v222, %v1166
        %vm1285 = vcmp.eq.s32.totalorder %v222, %v1169
        %vm1286 = vcmp.eq.s32.totalorder %v222, %v1172
        %vm1287 = vcmp.eq.s32.totalorder %v222, %v1175
        %vm1288 = vcmp.eq.s32.totalorder %v222, %v1178
        %vm1289 = vcmp.eq.s32.totalorder %v222, %v1181
        %vm1290 = vcmp.eq.s32.totalorder %v222, %v1184
        %vm1291 = vcmp.eq.s32.totalorder %v222, %v1187
        %vm1292 = vcmp.eq.s32.totalorder %v222, %v1190
        %vm1293 = vcmp.eq.s32.totalorder %v222, %v1193
        %vm1294 = vcmp.eq.s32.totalorder %v222, %v1196
        %vm1295 = vcmp.eq.s32.totalorder %v222, %v1199
        %vm1296 = vcmp.eq.s32.totalorder %v222, %v1202
        %vm1297 = vcmp.eq.s32.totalorder %v222, %v1205
        %vm1298 = vcmp.eq.s32.totalorder %v222, %v1208
        %vm1299 = vcmp.eq.s32.totalorder %v222, %v1211
        %vm1300 = vcmp.eq.s32.totalorder %v222, %v1214
        %vm1301 = vcmp.eq.s32.totalorder %v222, %v1217
        %vm1302 = vcmp.eq.s32.totalorder %v222, %v1220
        %vm1303 = vcmp.eq.s32.totalorder %v222, %v1223
        %vm1304 = vcmp.eq.s32.totalorder %v222, %v1226
        %vm1305 = vcmp.eq.s32.totalorder %v222, %v1229
        %vm1306 = vcmp.eq.s32.totalorder %v222, %v1232
        %vm1307 = vcmp.eq.s32.totalorder %v222, %v1235
        %vm1308 = vcmp.eq.s32.totalorder %v222, %v1238
        %vm1309 = vcmp.eq.s32.totalorder %v222, %v1241
        %vm1310 = vcmp.eq.s32.totalorder %v222, %v1244
        %vm1311 = vcmp.eq.s32.totalorder %v222, %v1247
        %vm1312 = vmor %vm287, %vm480
        %vm1313 = vmor %vm287, %vm481
        %vm1314 = vmor %vm287, %vm482
        %vm1315 = vmor %vm287, %vm483
        %vm1316 = vmor %vm287, %vm484
        %vm1317 = vmor %vm287, %vm485
        %vm1318 = vmor %vm287, %vm486
        %vm1319 = vmor %vm287, %vm487
        %vm1320 = vmor %vm287, %vm488
        %vm1321 = vmor %vm287, %vm489
        %vm1322 = vmor %vm287, %vm490
        %vm1323 = vmor %vm287, %vm491
        %vm1324 = vmor %vm287, %vm492
        %vm1325 = vmor %vm287, %vm493
        %vm1326 = vmor %vm287, %vm494
        %vm1327 = vmor %vm287, %vm495
        %vm1328 = vmor %vm287, %vm496
        %vm1329 = vmor %vm287, %vm497
        %vm1330 = vmor %vm287, %vm498
        %vm1331 = vmor %vm287, %vm499
        %vm1332 = vmor %vm287, %vm500
        %vm1333 = vmor %vm287, %vm501
        %vm1334 = vmor %vm287, %vm502
        %vm1335 = vmor %vm287, %vm503
        %vm1336 = vmor %vm287, %vm504
        %vm1337 = vmor %vm287, %vm505
        %vm1338 = vmor %vm287, %vm506
        %vm1339 = vmor %vm287, %vm507
        %vm1340 = vmor %vm287, %vm508
        %vm1341 = vmor %vm287, %vm509
        %vm1342 = vmor %vm287, %vm510
        %vm1343 = vmor %vm287, %vm511
        %vm1344 = vmor %vm287, %vm512
        %vm1345 = vmor %vm287, %vm513
        %vm1346 = vmor %vm287, %vm514
        %vm1347 = vmor %vm287, %vm515
        %vm1348 = vmor %vm287, %vm516
        %vm1349 = vmor %vm287, %vm517
        %vm1350 = vmor %vm287, %vm518
        %vm1351 = vmor %vm287, %vm519
        %vm1352 = vmor %vm287, %vm520
        %vm1353 = vmor %vm287, %vm521
        %vm1354 = vmor %vm287, %vm522
        %vm1355 = vmor %vm287, %vm523
        %vm1356 = vmor %vm287, %vm524
        %vm1357 = vmor %vm287, %vm525
        %vm1358 = vmor %vm287, %vm526
        %vm1359 = vmor %vm287, %vm527
        %vm1360 = vmor %vm287, %vm528
        %vm1361 = vmor %vm287, %vm529
        %vm1362 = vmor %vm287, %vm530
        %vm1363 = vmor %vm287, %vm531
        %vm1364 = vmor %vm287, %vm532
        %vm1365 = vmor %vm287, %vm533
        %vm1366 = vmor %vm287, %vm534
        %vm1367 = vmor %vm287, %vm535
        %vm1368 = vmor %vm287, %vm536
        %vm1369 = vmor %vm287, %vm537
        %vm1370 = vmor %vm287, %vm538
        %vm1371 = vmor %vm287, %vm539
        %vm1372 = vmor %vm287, %vm540
        %vm1373 = vmor %vm287, %vm541
        %vm1374 = vmor %vm287, %vm542
        %vm1375 = vmor %vm287, %vm543
        %vm1376 = vmor %vm736, %vm992
        %vm1377 = vmor %vm737, %vm993
        %vm1378 = vmor %vm738, %vm994
        %vm1379 = vmor %vm739, %vm995
        %vm1380 = vmor %vm740, %vm996
        %vm1381 = vmor %vm741, %vm997
        %vm1382 = vmor %vm742, %vm998
        %vm1383 = vmor %vm743, %vm999
        %vm1384 = vmor %vm744, %vm1000
        %vm1385 = vmor %vm745, %vm1001
        %vm1386 = vmor %vm746, %vm1002
        %vm1387 = vmor %vm747, %vm1003
        %vm1388 = vmor %vm748, %vm1004
        %vm1389 = vmor %vm749, %vm1005
        %vm1390 = vmor %vm750, %vm1006
        %vm1391 = vmor %vm751, %vm1007
        %vm1392 = vmor %vm752, %vm1008
        %vm1393 = vmor %vm753, %vm1009
        %vm1394 = vmor %vm754, %vm1010
        %vm1395 = vmor %vm755, %vm1011
        %vm1396 = vmor %vm756, %vm1012
        %vm1397 = vmor %vm757, %vm1013
        %vm1398 = vmor %vm758, %vm1014
        %vm1399 = vmor %vm759, %vm1015
        %vm1400 = vmor %vm760, %vm1016
        %vm1401 = vmor %vm761, %vm1017
        %vm1402 = vmor %vm762, %vm1018
        %vm1403 = vmor %vm763, %vm1019
        %vm1404 = vmor %vm764, %vm1020
        %vm1405 = vmor %vm765, %vm1021
        %vm1406 = vmor %vm766, %vm1022
        %vm1407 = vmor %vm767, %vm1023
        %vm1408 = vmor %vm768, %vm1024
        %vm1409 = vmor %vm769, %vm1025
        %vm1410 = vmor %vm770, %vm1026
        %vm1411 = vmor %vm771, %vm1027
        %vm1412 = vmor %vm772, %vm1028
        %vm1413 = vmor %vm773, %vm1029
        %vm1414 = vmor %vm774, %vm1030
        %vm1415 = vmor %vm775, %vm1031
        %vm1416 = vmor %vm776, %vm1032
        %vm1417 = vmor %vm777, %vm1033
        %vm1418 = vmor %vm778, %vm1034
        %vm1419 = vmor %vm779, %vm1035
        %vm1420 = vmor %vm780, %vm1036
        %vm1421 = vmor %vm781, %vm1037
        %vm1422 = vmor %vm782, %vm1038
        %vm1423 = vmor %vm783, %vm1039
        %vm1424 = vmor %vm784, %vm1040
        %vm1425 = vmor %vm785, %vm1041
        %vm1426 = vmor %vm786, %vm1042
        %vm1427 = vmor %vm787, %vm1043
        %vm1428 = vmor %vm788, %vm1044
        %vm1429 = vmor %vm789, %vm1045
        %vm1430 = vmor %vm790, %vm1046
        %vm1431 = vmor %vm791, %vm1047
        %vm1432 = vmor %vm792, %vm1048
        %vm1433 = vmor %vm793, %vm1049
        %vm1434 = vmor %vm794, %vm1050
        %vm1435 = vmor %vm795, %vm1051
        %vm1436 = vmor %vm796, %vm1052
        %vm1437 = vmor %vm797, %vm1053
        %vm1438 = vmor %vm798, %vm1054
        %vm1439 = vmor %vm799, %vm1055
        %vm1440 = vmor %vm1312, %vm1376
        %vm1441 = vmor %vm1313, %vm1377
        %vm1442 = vmor %vm1314, %vm1378
        %vm1443 = vmor %vm1315, %vm1379
        %vm1444 = vmor %vm1316, %vm1380
        %vm1445 = vmor %vm1317, %vm1381
        %vm1446 = vmor %vm1318, %vm1382
        %vm1447 = vmor %vm1319, %vm1383
        %vm1448 = vmor %vm1320, %vm1384
        %vm1449 = vmor %vm1321, %vm1385
        %vm1450 = vmor %vm1322, %vm1386
        %vm1451 = vmor %vm1323, %vm1387
        %vm1452 = vmor %vm1324, %vm1388
        %vm1453 = vmor %vm1325, %vm1389
        %vm1454 = vmor %vm1326, %vm1390
        %vm1455 = vmor %vm1327, %vm1391
        %vm1456 = vmor %vm1328, %vm1392
        %vm1457 = vmor %vm1329, %vm1393
        %vm1458 = vmor %vm1330, %vm1394
        %vm1459 = vmor %vm1331, %vm1395
        %vm1460 = vmor %vm1332, %vm1396
        %vm1461 = vmor %vm1333, %vm1397
        %vm1462 = vmor %vm1334, %vm1398
        %vm1463 = vmor %vm1335, %vm1399
        %vm1464 = vmor %vm1336, %vm1400
        %vm1465 = vmor %vm1337, %vm1401
        %vm1466 = vmor %vm1338, %vm1402
        %vm1467 = vmor %vm1339, %vm1403
        %vm1468 = vmor %vm1340, %vm1404
        %vm1469 = vmor %vm1341, %vm1405
        %vm1470 = vmor %vm1342, %vm1406
        %vm1471 = vmor %vm1343, %vm1407
        %vm1472 = vmor %vm1344, %vm1408
        %vm1473 = vmor %vm1345, %vm1409
        %vm1474 = vmor %vm1346, %vm1410
        %vm1475 = vmor %vm1347, %vm1411
        %vm1476 = vmor %vm1348, %vm1412
        %vm1477 = vmor %vm1349, %vm1413
        %vm1478 = vmor %vm1350, %vm1414
        %vm1479 = vmor %vm1351, %vm1415
        %vm1480 = vmor %vm1352, %vm1416
        %vm1481 = vmor %vm1353, %vm1417
        %vm1482 = vmor %vm1354, %vm1418
        %vm1483 = vmor %vm1355, %vm1419
        %vm1484 = vmor %vm1356, %vm1420
        %vm1485 = vmor %vm1357, %vm1421
        %vm1486 = vmor %vm1358, %vm1422
        %vm1487 = vmor %vm1359, %vm1423
        %vm1488 = vmor %vm1360, %vm1424
        %vm1489 = vmor %vm1361, %vm1425
        %vm1490 = vmor %vm1362, %vm1426
        %vm1491 = vmor %vm1363, %vm1427
        %vm1492 = vmor %vm1364, %vm1428
        %vm1493 = vmor %vm1365, %vm1429
        %vm1494 = vmor %vm1366, %vm1430
        %vm1495 = vmor %vm1367, %vm1431
        %vm1496 = vmor %vm1368, %vm1432
        %vm1497 = vmor %vm1369, %vm1433
        %vm1498 = vmor %vm1370, %vm1434
        %vm1499 = vmor %vm1371, %vm1435
        %vm1500 = vmor %vm1372, %vm1436
        %vm1501 = vmor %vm1373, %vm1437
        %vm1502 = vmor %vm1374, %vm1438
        %vm1503 = vmor %vm1375, %vm1439
        %vm1504 = vmor %vm1440, %vm1248
        %vm1505 = vmor %vm1441, %vm1249
        %vm1506 = vmor %vm1442, %vm1250
        %vm1507 = vmor %vm1443, %vm1251
        %vm1508 = vmor %vm1444, %vm1252
        %vm1509 = vmor %vm1445, %vm1253
        %vm1510 = vmor %vm1446, %vm1254
        %vm1511 = vmor %vm1447, %vm1255
        %vm1512 = vmor %vm1448, %vm1256
        %vm1513 = vmor %vm1449, %vm1257
        %vm1514 = vmor %vm1450, %vm1258
        %vm1515 = vmor %vm1451, %vm1259
        %vm1516 = vmor %vm1452, %vm1260
        %vm1517 = vmor %vm1453, %vm1261
        %vm1518 = vmor %vm1454, %vm1262
        %vm1519 = vmor %vm1455, %vm1263
        %vm1520 = vmor %vm1456, %vm1264
        %vm1521 = vmor %vm1457, %vm1265
        %vm1522 = vmor %vm1458, %vm1266
        %vm1523 = vmor %vm1459, %vm1267
        %vm1524 = vmor %vm1460, %vm1268
        %vm1525 = vmor %vm1461, %vm1269
        %vm1526 = vmor %vm1462, %vm1270
        %vm1527 = vmor %vm1463, %vm1271
        %vm1528 = vmor %vm1464, %vm1272
        %vm1529 = vmor %vm1465, %vm1273
        %vm1530 = vmor %vm1466, %vm1274
        %vm1531 = vmor %vm1467, %vm1275
        %vm1532 = vmor %vm1468, %vm1276
        %vm1533 = vmor %vm1469, %vm1277
        %vm1534 = vmor %vm1470, %vm1278
        %vm1535 = vmor %vm1471, %vm1279
        %vm1536 = vmor %vm1472, %vm1280
        %vm1537 = vmor %vm1473, %vm1281
        %vm1538 = vmor %vm1474, %vm1282
        %vm1539 = vmor %vm1475, %vm1283
        %vm1540 = vmor %vm1476, %vm1284
        %vm1541 = vmor %vm1477, %vm1285
        %vm1542 = vmor %vm1478, %vm1286
        %vm1543 = vmor %vm1479, %vm1287
        %vm1544 = vmor %vm1480, %vm1288
        %vm1545 = vmor %vm1481, %vm1289
        %vm1546 = vmor %vm1482, %vm1290
        %vm1547 = vmor %vm1483, %vm1291
        %vm1548 = vmor %vm1484, %vm1292
        %vm1549 = vmor %vm1485, %vm1293
        %vm1550 = vmor %vm1486, %vm1294
        %vm1551 = vmor %vm1487, %vm1295
        %vm1552 = vmor %vm1488, %vm1296
        %vm1553 = vmor %vm1489, %vm1297
        %vm1554 = vmor %vm1490, %vm1298
        %vm1555 = vmor %vm1491, %vm1299
        %vm1556 = vmor %vm1492, %vm1300
        %vm1557 = vmor %vm1493, %vm1301
        %vm1558 = vmor %vm1494, %vm1302
        %vm1559 = vmor %vm1495, %vm1303
        %vm1560 = vmor %vm1496, %vm1304
        %vm1561 = vmor %vm1497, %vm1305
        %vm1562 = vmor %vm1498, %vm1306
        %vm1563 = vmor %vm1499, %vm1307
        %vm1564 = vmor %vm1500, %vm1308
        %vm1565 = vmor %vm1501, %vm1309
        %vm1566 = vmor %vm1502, %vm1310
        %vm1567 = vmor %vm1503, %vm1311
        %v1568 = vsel %vm1504, 1, 0
        %v1569 = vsel %vm1505, 1, 0
        %v1570 = vsel %vm1506, 1, 0
        %v1571 = vsel %vm1507, 1, 0
        %v1572 = vsel %vm1508, 1, 0
        %v1573 = vsel %vm1509, 1, 0
        %v1574 = vsel %vm1510, 1, 0
        %v1575 = vsel %vm1511, 1, 0
        %v1576 = vsel %vm1512, 1, 0
        %v1577 = vsel %vm1513, 1, 0
        %v1578 = vsel %vm1514, 1, 0
        %v1579 = vsel %vm1515, 1, 0
        %v1580 = vsel %vm1516, 1, 0
        %v1581 = vsel %vm1517, 1, 0
        %v1582 = vsel %vm1518, 1, 0
        %v1583 = vsel %vm1519, 1, 0
        %v1584 = vsel %vm1520, 1, 0
        %v1585 = vsel %vm1521, 1, 0
        %v1586 = vsel %vm1522, 1, 0
        %v1587 = vsel %vm1523, 1, 0
        %v1588 = vsel %vm1524, 1, 0
        %v1589 = vsel %vm1525, 1, 0
        %v1590 = vsel %vm1526, 1, 0
        %v1591 = vsel %vm1527, 1, 0
        %v1592 = vsel %vm1528, 1, 0
        %v1593 = vsel %vm1529, 1, 0
        %v1594 = vsel %vm1530, 1, 0
        %v1595 = vsel %vm1531, 1, 0
        %v1596 = vsel %vm1532, 1, 0
        %v1597 = vsel %vm1533, 1, 0
        %v1598 = vsel %vm1534, 1, 0
        %v1599 = vsel %vm1535, 1, 0
        %v1600 = vsel %vm1536, 1, 0
        %v1601 = vsel %vm1537, 1, 0
        %v1602 = vsel %vm1538, 1, 0
        %v1603 = vsel %vm1539, 1, 0
        %v1604 = vsel %vm1540, 1, 0
        %v1605 = vsel %vm1541, 1, 0
        %v1606 = vsel %vm1542, 1, 0
        %v1607 = vsel %vm1543, 1, 0
        %v1608 = vsel %vm1544, 1, 0
        %v1609 = vsel %vm1545, 1, 0
        %v1610 = vsel %vm1546, 1, 0
        %v1611 = vsel %vm1547, 1, 0
        %v1612 = vsel %vm1548, 1, 0
        %v1613 = vsel %vm1549, 1, 0
        %v1614 = vsel %vm1550, 1, 0
        %v1615 = vsel %vm1551, 1, 0
        %v1616 = vsel %vm1552, 1, 0
        %v1617 = vsel %vm1553, 1, 0
        %v1618 = vsel %vm1554, 1, 0
        %v1619 = vsel %vm1555, 1, 0
        %v1620 = vsel %vm1556, 1, 0
        %v1621 = vsel %vm1557, 1, 0
        %v1622 = vsel %vm1558, 1, 0
        %v1623 = vsel %vm1559, 1, 0
        %v1624 = vsel %vm1560, 1, 0
        %v1625 = vsel %vm1561, 1, 0
        %v1626 = vsel %vm1562, 1, 0
        %v1627 = vsel %vm1563, 1, 0
        %v1628 = vsel %vm1564, 1, 0
        %v1629 = vsel %vm1565, 1, 0
        %v1630 = vsel %vm1566, 1, 0
        %v1631 = vsel %vm1567, 1, 0
        %v1632 = vcvt.s32.f32 %v1568
        %v1633 = vcvt.s32.f32 %v1569
        %v1634 = vcvt.s32.f32 %v1570
        %v1635 = vcvt.s32.f32 %v1571
        %v1636 = vcvt.s32.f32 %v1572
        %v1637 = vcvt.s32.f32 %v1573
        %v1638 = vcvt.s32.f32 %v1574
        %v1639 = vcvt.s32.f32 %v1575
        %v1640 = vcvt.s32.f32 %v1576
        %v1641 = vcvt.s32.f32 %v1577
        %v1642 = vcvt.s32.f32 %v1578
        %v1643 = vcvt.s32.f32 %v1579
        %v1644 = vcvt.s32.f32 %v1580
        %v1645 = vcvt.s32.f32 %v1581
        %v1646 = vcvt.s32.f32 %v1582
        %v1647 = vcvt.s32.f32 %v1583
        %v1648 = vcvt.s32.f32 %v1584
        %v1649 = vcvt.s32.f32 %v1585
        %v1650 = vcvt.s32.f32 %v1586
        %v1651 = vcvt.s32.f32 %v1587
        %v1652 = vcvt.s32.f32 %v1588
        %v1653 = vcvt.s32.f32 %v1589
        %v1654 = vcvt.s32.f32 %v1590
        %v1655 = vcvt.s32.f32 %v1591
        %v1656 = vcvt.s32.f32 %v1592
        %v1657 = vcvt.s32.f32 %v1593
        %v1658 = vcvt.s32.f32 %v1594
        %v1659 = vcvt.s32.f32 %v1595
        %v1660 = vcvt.s32.f32 %v1596
        %v1661 = vcvt.s32.f32 %v1597
        %v1662 = vcvt.s32.f32 %v1598
        %v1663 = vcvt.s32.f32 %v1599
        %v1664 = vcvt.s32.f32 %v1600
        %v1665 = vcvt.s32.f32 %v1601
        %v1666 = vcvt.s32.f32 %v1602
        %v1667 = vcvt.s32.f32 %v1603
        %v1668 = vcvt.s32.f32 %v1604
        %v1669 = vcvt.s32.f32 %v1605
        %v1670 = vcvt.s32.f32 %v1606
        %v1671 = vcvt.s32.f32 %v1607
        %v1672 = vcvt.s32.f32 %v1608
        %v1673 = vcvt.s32.f32 %v1609
        %v1674 = vcvt.s32.f32 %v1610
        %v1675 = vcvt.s32.f32 %v1611
        %v1676 = vcvt.s32.f32 %v1612
        %v1677 = vcvt.s32.f32 %v1613
        %v1678 = vcvt.s32.f32 %v1614
        %v1679 = vcvt.s32.f32 %v1615
        %v1680 = vcvt.s32.f32 %v1616
        %v1681 = vcvt.s32.f32 %v1617
        %v1682 = vcvt.s32.f32 %v1618
        %v1683 = vcvt.s32.f32 %v1619
        %v1684 = vcvt.s32.f32 %v1620
        %v1685 = vcvt.s32.f32 %v1621
        %v1686 = vcvt.s32.f32 %v1622
        %v1687 = vcvt.s32.f32 %v1623
        %v1688 = vcvt.s32.f32 %v1624
        %v1689 = vcvt.s32.f32 %v1625
        %v1690 = vcvt.s32.f32 %v1626
        %v1691 = vcvt.s32.f32 %v1627
        %v1692 = vcvt.s32.f32 %v1628
        %v1693 = vcvt.s32.f32 %v1629
        %v1694 = vcvt.s32.f32 %v1630
        %v1695 = vcvt.s32.f32 %v1631
        %v1696 = vld [vmem:[%s218] sm:$0xff]
        %v1697 = vld [vmem:[%s218 + $0x8] sm:$0xff]
        %v1698 = vld [vmem:[%s218 + $0x10] sm:$0xff]
        %v1699 = vld [vmem:[%s218 + $0x18] sm:$0xff]
        %v1700 = vld [vmem:[%s218 + $0x20] sm:$0xff]
        %v1701 = vld [vmem:[%s218 + $0x28] sm:$0xff]
        %v1702 = vld [vmem:[%s218 + $0x30] sm:$0xff]
        %v1703 = vld [vmem:[%s218 + $0x38] sm:$0xff]
        %v1704 = vld [vmem:[%s218 + $0x40] sm:$0xff]
        %v1705 = vld [vmem:[%s218 + $0x48] sm:$0xff]
        %v1706 = vld [vmem:[%s218 + $0x50] sm:$0xff]
        %v1707 = vld [vmem:[%s218 + $0x58] sm:$0xff]
        %v1708 = vld [vmem:[%s218 + $0x60] sm:$0xff]
        %v1709 = vld [vmem:[%s218 + $0x68] sm:$0xff]
        %v1710 = vld [vmem:[%s218 + $0x70] sm:$0xff]
        %v1711 = vld [vmem:[%s218 + $0x78] sm:$0xff]
        %v1712 = vld [vmem:[%s218 + $0x80] sm:$0xff]
        %v1713 = vld [vmem:[%s218 + $0x88] sm:$0xff]
        %v1714 = vld [vmem:[%s218 + $0x90] sm:$0xff]
        %v1715 = vld [vmem:[%s218 + $0x98] sm:$0xff]
        %v1716 = vld [vmem:[%s218 + $0xa0] sm:$0xff]
        %v1717 = vld [vmem:[%s218 + $0xa8] sm:$0xff]
        %v1718 = vld [vmem:[%s218 + $0xb0] sm:$0xff]
        %v1719 = vld [vmem:[%s218 + $0xb8] sm:$0xff]
        %v1720 = vld [vmem:[%s218 + $0xc0] sm:$0xff]
        %v1721 = vld [vmem:[%s218 + $0xc8] sm:$0xff]
        %v1722 = vld [vmem:[%s218 + $0xd0] sm:$0xff]
        %v1723 = vld [vmem:[%s218 + $0xd8] sm:$0xff]
        %v1724 = vld [vmem:[%s218 + $0xe0] sm:$0xff]
        %v1725 = vld [vmem:[%s218 + $0xe8] sm:$0xff]
        %v1726 = vld [vmem:[%s218 + $0xf0] sm:$0xff]
        %v1727 = vld [vmem:[%s218 + $0xf8] sm:$0xff]
        %v1728 = vld [vmem:[%s218 + $0x100] sm:$0xff]
        %v1729 = vld [vmem:[%s218 + $0x108] sm:$0xff]
        %v1730 = vld [vmem:[%s218 + $0x110] sm:$0xff]
        %v1731 = vld [vmem:[%s218 + $0x118] sm:$0xff]
        %v1732 = vld [vmem:[%s218 + $0x120] sm:$0xff]
        %v1733 = vld [vmem:[%s218 + $0x128] sm:$0xff]
        %v1734 = vld [vmem:[%s218 + $0x130] sm:$0xff]
        %v1735 = vld [vmem:[%s218 + $0x138] sm:$0xff]
        %v1736 = vld [vmem:[%s218 + $0x140] sm:$0xff]
        %v1737 = vld [vmem:[%s218 + $0x148] sm:$0xff]
        %v1738 = vld [vmem:[%s218 + $0x150] sm:$0xff]
        %v1739 = vld [vmem:[%s218 + $0x158] sm:$0xff]
        %v1740 = vld [vmem:[%s218 + $0x160] sm:$0xff]
        %v1741 = vld [vmem:[%s218 + $0x168] sm:$0xff]
        %v1742 = vld [vmem:[%s218 + $0x170] sm:$0xff]
        %v1743 = vld [vmem:[%s218 + $0x178] sm:$0xff]
        %v1744 = vld [vmem:[%s218 + $0x180] sm:$0xff]
        %v1745 = vld [vmem:[%s218 + $0x188] sm:$0xff]
        %v1746 = vld [vmem:[%s218 + $0x190] sm:$0xff]
        %v1747 = vld [vmem:[%s218 + $0x198] sm:$0xff]
        %v1748 = vld [vmem:[%s218 + $0x1a0] sm:$0xff]
        %v1749 = vld [vmem:[%s218 + $0x1a8] sm:$0xff]
        %v1750 = vld [vmem:[%s218 + $0x1b0] sm:$0xff]
        %v1751 = vld [vmem:[%s218 + $0x1b8] sm:$0xff]
        %v1752 = vld [vmem:[%s218 + $0x1c0] sm:$0xff]
        %v1753 = vld [vmem:[%s218 + $0x1c8] sm:$0xff]
        %v1754 = vld [vmem:[%s218 + $0x1d0] sm:$0xff]
        %v1755 = vld [vmem:[%s218 + $0x1d8] sm:$0xff]
        %v1756 = vld [vmem:[%s218 + $0x1e0] sm:$0xff]
        %v1757 = vld [vmem:[%s218 + $0x1e8] sm:$0xff]
        %v1758 = vld [vmem:[%s218 + $0x1f0] sm:$0xff]
        %v1759 = vld [vmem:[%s218 + $0x1f8] sm:$0xff]
        %v1760 = vld [vmem:[%s2] sm:$0xff]
        %v1761 = vld [vmem:[%s2 + $0x8] sm:$0xff]
        %v1762 = vld [vmem:[%s2 + $0x10] sm:$0xff]
        %v1763 = vld [vmem:[%s2 + $0x18] sm:$0xff]
        %v1764 = vld [vmem:[%s3] sm:$0xff]
        %v1765 = vld [vmem:[%s3 + $0x8] sm:$0xff]
        %v1766 = vld [vmem:[%s3 + $0x10] sm:$0xff]
        %vm1767 = vcmask 195584
        %v1769 = vsel %vm1767, %v1632, 0
        %v1772 = vsel %vm1767, %v1633, 0
        %v1775 = vsel %vm1767, %v1634, 0
        %v1778 = vsel %vm1767, %v1635, 0
        %v1781 = vsel %vm1767, %v1636, 0
        %v1784 = vsel %vm1767, %v1637, 0
        %v1787 = vsel %vm1767, %v1638, 0
        %v1790 = vsel %vm1767, %v1639, 0
        %v1793 = vsel %vm1767, %v1640, 0
        %v1796 = vsel %vm1767, %v1641, 0
        %v1799 = vsel %vm1767, %v1642, 0
        %v1802 = vsel %vm1767, %v1643, 0
        %v1805 = vsel %vm1767, %v1644, 0
        %v1808 = vsel %vm1767, %v1645, 0
        %v1811 = vsel %vm1767, %v1646, 0
        %v1814 = vsel %vm1767, %v1647, 0
        %v1817 = vsel %vm1767, %v1648, 0
        %v1820 = vsel %vm1767, %v1649, 0
        %v1823 = vsel %vm1767, %v1650, 0
        %v1826 = vsel %vm1767, %v1651, 0
        %v1829 = vsel %vm1767, %v1652, 0
        %v1832 = vsel %vm1767, %v1653, 0
        %v1835 = vsel %vm1767, %v1654, 0
        %v1838 = vsel %vm1767, %v1655, 0
        %v1841 = vsel %vm1767, %v1656, 0
        %v1844 = vsel %vm1767, %v1657, 0
        %v1847 = vsel %vm1767, %v1658, 0
        %v1850 = vsel %vm1767, %v1659, 0
        %v1853 = vsel %vm1767, %v1660, 0
        %v1856 = vsel %vm1767, %v1661, 0
        %v1859 = vsel %vm1767, %v1662, 0
        %v1862 = vsel %vm1767, %v1663, 0
        %v1865 = vsel %vm1767, %v1664, 0
        %v1868 = vsel %vm1767, %v1665, 0
        %v1871 = vsel %vm1767, %v1666, 0
        %v1874 = vsel %vm1767, %v1667, 0
        %v1877 = vsel %vm1767, %v1668, 0
        %v1880 = vsel %vm1767, %v1669, 0
        %v1883 = vsel %vm1767, %v1670, 0
        %v1886 = vsel %vm1767, %v1671, 0
        %v1889 = vsel %vm1767, %v1672, 0
        %v1892 = vsel %vm1767, %v1673, 0
        %v1895 = vsel %vm1767, %v1674, 0
        %v1898 = vsel %vm1767, %v1675, 0
        %v1901 = vsel %vm1767, %v1676, 0
        %v1904 = vsel %vm1767, %v1677, 0
        %v1907 = vsel %vm1767, %v1678, 0
        %v1910 = vsel %vm1767, %v1679, 0
        %v1913 = vsel %vm1767, %v1680, 0
        %v1916 = vsel %vm1767, %v1681, 0
        %v1919 = vsel %vm1767, %v1682, 0
        %v1922 = vsel %vm1767, %v1683, 0
        %v1925 = vsel %vm1767, %v1684, 0
        %v1928 = vsel %vm1767, %v1685, 0
        %v1931 = vsel %vm1767, %v1686, 0
        %v1934 = vsel %vm1767, %v1687, 0
        %v1937 = vsel %vm1767, %v1688, 0
        %v1940 = vsel %vm1767, %v1689, 0
        %v1943 = vsel %vm1767, %v1690, 0
        %v1946 = vsel %vm1767, %v1691, 0
        %v1949 = vsel %vm1767, %v1692, 0
        %v1952 = vsel %vm1767, %v1693, 0
        %v1955 = vsel %vm1767, %v1694, 0
        %v1958 = vsel %vm1767, %v1695, 0
        %1960 = vmatprep.subr.mxu0 0.0
        %1961 = vmatpush1.msra.mxu0 %v1764
        %1962 = vmatprep.subr.mxu0 0.0
        %1963 = vmatpush1.msra.mxu0 %v1765
        %1964 = vmatprep.subr.mxu0 0.0
        %1965 = vmatpush1.msra.mxu0 %v1766
        %1966 = vmatprep.subr.mxu0 0.0
        %1967 = vmatpush1.msra.mxu0 0.0
        %1968 = vmatprep.subr.mxu0 0.0
        %1969 = vmatpush1.msra.mxu0 0.0
        %1970 = vmatprep.subr.mxu0 0.0
        %1971 = vmatpush1.msra.mxu0 0.0
        %1972 = vmatprep.subr.mxu0 0.0
        %1973 = vmatpush1.msra.mxu0 0.0
        %1974 = vmatprep.subr.mxu0 0.0
        %1975 = vmatpush1.msra.mxu0 0.0
        %1976 = vmatprep.subr.mxu0 0.0
        %1977 = vmatpush1.msra.mxu0 0.0
        %1978 = vmatprep.subr.mxu0 0.0
        %1979 = vmatpush1.msra.mxu0 0.0
        %1980 = vmatprep.subr.mxu0 0.0
        %1981 = vmatpush1.msra.mxu0 0.0
        %1982 = vmatprep.subr.mxu0 0.0
        %1983 = vmatpush1.msra.mxu0 0.0
        %1984 = vmatprep.subr.mxu0 0.0
        %1985 = vmatpush1.msra.mxu0 0.0
        %1986 = vmatprep.subr.mxu0 0.0
        %1987 = vmatpush1.msra.mxu0 0.0
        %1988 = vmatprep.subr.mxu0 0.0
        %1989 = vmatpush1.msra.mxu0 0.0
        %1990 = vmatprep.subr.mxu0 0.0
        %1991 = vmatpush1.msra.mxu0 0.0
        %1992 = vmatprep.subr.mxu0 0.0
        %1993 = vmatpush1.msra.mxu0 0.0
        %1994 = vmatprep.subr.mxu0 0.0
        %1995 = vmatpush1.msra.mxu0 0.0
        %1996 = vmatprep.subr.mxu0 0.0
        %1997 = vmatpush1.msra.mxu0 0.0
        %1998 = vmatprep.subr.mxu0 0.0
        %1999 = vmatpush1.msra.mxu0 0.0
        %2000 = vmatprep.subr.mxu0 0.0
        %2001 = vmatpush1.msra.mxu0 0.0
        %2002 = vmatprep.subr.mxu0 0.0
        %2003 = vmatpush1.msra.mxu0 0.0
        %2004 = vmatprep.subr.mxu0 0.0
        %2005 = vmatpush1.msra.mxu0 0.0
        %2006 = vmatprep.subr.mxu0 0.0
        %2007 = vmatpush1.msra.mxu0 0.0
        %2008 = vmatprep.subr.mxu0 0.0
        %2009 = vmatpush1.msra.mxu0 0.0
        %2010 = vmatprep.subr.mxu0 0.0
        %2011 = vmatpush1.msra.mxu0 0.0
        %2012 = vmatprep.subr.mxu0 0.0
        %2013 = vmatpush1.msra.mxu0 0.0
        %2014 = vmatprep.subr.mxu0 0.0
        %2015 = vmatpush1.msra.mxu0 0.0
        %2016 = vmatprep.subr.mxu0 0.0
        %2017 = vmatpush1.msra.mxu0 0.0
        %2018 = vmatprep.subr.mxu0 0.0
        %2019 = vmatpush1.msra.mxu0 0.0
        %2020 = vmatprep.subr.mxu0 0.0
        %2021 = vmatpush1.msra.mxu0 0.0
        %2022 = vmatprep.subr.mxu0 0.0
        %2023 = vmatpush1.msra.mxu0 0.0
        %2024 = vmatprep.mubr.f32.mxu0 0.0
        %2025 = vmatmul.mubr.f32.gmra.mrb[0].mxu0 %v1769
        %v2026 = vpop.f32.mrb[0].mxu0
        %v2027 = vadd.f32 0.0, %v2026
        %v2028 = vpop.f32.mrb[0].mxu0
        %2029 = vmatprep.mubr.f32.mxu0 0.0
        %2030 = vmatmul.mubr.f32.gmra.mrb[0].mxu0 %v1772
        %v2031 = vpop.f32.mrb[0].mxu0
        %v2032 = vadd.f32 0.0, %v2031
        %v2033 = vpop.f32.mrb[0].mxu0
        %2034 = vmatprep.mubr.f32.mxu0 0.0
        %2035 = vmatmul.mubr.f32.gmra.mrb[0].mxu0 %v1775
        %v2036 = vpop.f32.mrb[0].mxu0
        %v2037 = vadd.f32 0.0, %v2036
        %v2038 = vpop.f32.mrb[0].mxu0
        %2039 = vmatprep.mubr.f32.mxu0 0.0
        %2040 = vmatmul.mubr.f32.gmra.mrb[0].mxu0 %v1778
        %v2041 = vpop.f32.mrb[0].mxu0
        %v2042 = vadd.f32 0.0, %v2041
        %v2043 = vpop.f32.mrb[0].mxu0
        %2044 = vmatprep.mubr.f32.mxu0 0.0
        %2045 = vmatmul.mubr.f32.gmra.mrb[0].mxu0 %v1781
        %v2046 = vpop.f32.mrb[0].mxu0
        %v2047 = vadd.f32 0.0, %v2046
        %v2048 = vpop.f32.mrb[0].mxu0
        %2049 = vmatprep.mubr.f32.mxu0 0.0
        %2050 = vmatmul.mubr.f32.gmra.mrb[0].mxu0 %v1784
        %v2051 = vpop.f32.mrb[0].mxu0
        %v2052 = vadd.f32 0.0, %v2051
        %v2053 = vpop.f32.mrb[0].mxu0
        %2054 = vmatprep.mubr.f32.mxu0 0.0
        %2055 = vmatmul.mubr.f32.gmra.mrb[0].mxu0 %v1787
        %v2056 = vpop.f32.mrb[0].mxu0
        %v2057 = vadd.f32 0.0, %v2056
        %v2058 = vpop.f32.mrb[0].mxu0
        %2059 = vmatprep.mubr.f32.mxu0 0.0
        %2060 = vmatmul.mubr.f32.gmra.mrb[0].mxu0 %v1790
        %v2061 = vpop.f32.mrb[0].mxu0
        %v2062 = vadd.f32 0.0, %v2061
        %v2063 = vpop.f32.mrb[0].mxu0
        %2064 = vmatprep.mubr.f32.mxu0 0.0
        %2065 = vmatmul.mubr.f32.gmra.mrb[0].mxu0 %v1793
        %v2066 = vpop.f32.mrb[0].mxu0
        %v2067 = vadd.f32 0.0, %v2066
        %v2068 = vpop.f32.mrb[0].mxu0
        %2069 = vmatprep.mubr.f32.mxu0 0.0
        %2070 = vmatmul.mubr.f32.gmra.mrb[0].mxu0 %v1796
        %v2071 = vpop.f32.mrb[0].mxu0
        %v2072 = vadd.f32 0.0, %v2071
        %v2073 = vpop.f32.mrb[0].mxu0
        %2074 = vmatprep.mubr.f32.mxu0 0.0
        %2075 = vmatmul.mubr.f32.gmra.mrb[0].mxu0 %v1799
        %v2076 = vpop.f32.mrb[0].mxu0
        %v2077 = vadd.f32 0.0, %v2076
        %v2078 = vpop.f32.mrb[0].mxu0
        %2079 = vmatprep.mubr.f32.mxu0 0.0
        %2080 = vmatmul.mubr.f32.gmra.mrb[0].mxu0 %v1802
        %v2081 = vpop.f32.mrb[0].mxu0
        %v2082 = vadd.f32 0.0, %v2081
        %v2083 = vpop.f32.mrb[0].mxu0
        %2084 = vmatprep.mubr.f32.mxu0 0.0
        %2085 = vmatmul.mubr.f32.gmra.mrb[0].mxu0 %v1805
        %v2086 = vpop.f32.mrb[0].mxu0
        %v2087 = vadd.f32 0.0, %v2086
        %v2088 = vpop.f32.mrb[0].mxu0
        %2089 = vmatprep.mubr.f32.mxu0 0.0
        %2090 = vmatmul.mubr.f32.gmra.mrb[0].mxu0 %v1808
        %v2091 = vpop.f32.mrb[0].mxu0
        %v2092 = vadd.f32 0.0, %v2091
        %v2093 = vpop.f32.mrb[0].mxu0
        %2094 = vmatprep.mubr.f32.mxu0 0.0
        %2095 = vmatmul.mubr.f32.gmra.mrb[0].mxu0 %v1811
        %v2096 = vpop.f32.mrb[0].mxu0
        %v2097 = vadd.f32 0.0, %v2096
        %v2098 = vpop.f32.mrb[0].mxu0
        %2099 = vmatprep.mubr.f32.mxu0 0.0
        %2100 = vmatmul.mubr.f32.gmra.mrb[0].mxu0 %v1814
        %v2101 = vpop.f32.mrb[0].mxu0
        %v2102 = vadd.f32 0.0, %v2101
        %v2103 = vpop.f32.mrb[0].mxu0
        %2104 = vmatprep.mubr.f32.mxu0 0.0
        %2105 = vmatmul.mubr.f32.gmra.mrb[0].mxu0 %v1817
        %v2106 = vpop.f32.mrb[0].mxu0
        %v2107 = vadd.f32 0.0, %v2106
        %v2108 = vpop.f32.mrb[0].mxu0
        %2109 = vmatprep.mubr.f32.mxu0 0.0
        %2110 = vmatmul.mubr.f32.gmra.mrb[0].mxu0 %v1820
        %v2111 = vpop.f32.mrb[0].mxu0
        %v2112 = vadd.f32 0.0, %v2111
        %v2113 = vpop.f32.mrb[0].mxu0
        %2114 = vmatprep.mubr.f32.mxu0 0.0
        %2115 = vmatmul.mubr.f32.gmra.mrb[0].mxu0 %v1823
        %v2116 = vpop.f32.mrb[0].mxu0
        %v2117 = vadd.f32 0.0, %v2116
        %v2118 = vpop.f32.mrb[0].mxu0
        %2119 = vmatprep.mubr.f32.mxu0 0.0
        %2120 = vmatmul.mubr.f32.gmra.mrb[0].mxu0 %v1826
        %v2121 = vpop.f32.mrb[0].mxu0
        %v2122 = vadd.f32 0.0, %v2121
        %v2123 = vpop.f32.mrb[0].mxu0
        %2124 = vmatprep.mubr.f32.mxu0 0.0
        %2125 = vmatmul.mubr.f32.gmra.mrb[0].mxu0 %v1829
        %v2126 = vpop.f32.mrb[0].mxu0
        %v2127 = vadd.f32 0.0, %v2126
        %v2128 = vpop.f32.mrb[0].mxu0
        %2129 = vmatprep.mubr.f32.mxu0 0.0
        %2130 = vmatmul.mubr.f32.gmra.mrb[0].mxu0 %v1832
        %v2131 = vpop.f32.mrb[0].mxu0
        %v2132 = vadd.f32 0.0, %v2131
        %v2133 = vpop.f32.mrb[0].mxu0
        %2134 = vmatprep.mubr.f32.mxu0 0.0
        %2135 = vmatmul.mubr.f32.gmra.mrb[0].mxu0 %v1835
        %v2136 = vpop.f32.mrb[0].mxu0
        %v2137 = vadd.f32 0.0, %v2136
        %v2138 = vpop.f32.mrb[0].mxu0
        %2139 = vmatprep.mubr.f32.mxu0 0.0
        %2140 = vmatmul.mubr.f32.gmra.mrb[0].mxu0 %v1838
        %v2141 = vpop.f32.mrb[0].mxu0
        %v2142 = vadd.f32 0.0, %v2141
        %v2143 = vpop.f32.mrb[0].mxu0
        %2144 = vmatprep.mubr.f32.mxu0 0.0
        %2145 = vmatmul.mubr.f32.gmra.mrb[0].mxu0 %v1841
        %v2146 = vpop.f32.mrb[0].mxu0
        %v2147 = vadd.f32 0.0, %v2146
        %v2148 = vpop.f32.mrb[0].mxu0
        %2149 = vmatprep.mubr.f32.mxu0 0.0
        %2150 = vmatmul.mubr.f32.gmra.mrb[0].mxu0 %v1844
        %v2151 = vpop.f32.mrb[0].mxu0
        %v2152 = vadd.f32 0.0, %v2151
        %v2153 = vpop.f32.mrb[0].mxu0
        %2154 = vmatprep.mubr.f32.mxu0 0.0
        %2155 = vmatmul.mubr.f32.gmra.mrb[0].mxu0 %v1847
        %v2156 = vpop.f32.mrb[0].mxu0
        %v2157 = vadd.f32 0.0, %v2156
        %v2158 = vpop.f32.mrb[0].mxu0
        %2159 = vmatprep.mubr.f32.mxu0 0.0
        %2160 = vmatmul.mubr.f32.gmra.mrb[0].mxu0 %v1850
        %v2161 = vpop.f32.mrb[0].mxu0
        %v2162 = vadd.f32 0.0, %v2161
        %v2163 = vpop.f32.mrb[0].mxu0
        %2164 = vmatprep.mubr.f32.mxu0 0.0
        %2165 = vmatmul.mubr.f32.gmra.mrb[0].mxu0 %v1853
        %v2166 = vpop.f32.mrb[0].mxu0
        %v2167 = vadd.f32 0.0, %v2166
        %v2168 = vpop.f32.mrb[0].mxu0
        %2169 = vmatprep.mubr.f32.mxu0 0.0
        %2170 = vmatmul.mubr.f32.gmra.mrb[0].mxu0 %v1856
        %v2171 = vpop.f32.mrb[0].mxu0
        %v2172 = vadd.f32 0.0, %v2171
        %v2173 = vpop.f32.mrb[0].mxu0
        %2174 = vmatprep.mubr.f32.mxu0 0.0
        %2175 = vmatmul.mubr.f32.gmra.mrb[0].mxu0 %v1859
        %v2176 = vpop.f32.mrb[0].mxu0
        %v2177 = vadd.f32 0.0, %v2176
        %v2178 = vpop.f32.mrb[0].mxu0
        %2179 = vmatprep.mubr.f32.mxu0 0.0
        %2180 = vmatmul.mubr.f32.gmra.mrb[0].mxu0 %v1862
        %v2181 = vpop.f32.mrb[0].mxu0
        %v2182 = vadd.f32 0.0, %v2181
        %v2183 = vpop.f32.mrb[0].mxu0
        %2184 = vmatprep.mubr.f32.mxu0 0.0
        %2185 = vmatmul.mubr.f32.gmra.mrb[0].mxu0 %v1865
        %v2186 = vpop.f32.mrb[0].mxu0
        %v2187 = vadd.f32 0.0, %v2186
        %v2188 = vpop.f32.mrb[0].mxu0
        %2189 = vmatprep.mubr.f32.mxu0 0.0
        %2190 = vmatmul.mubr.f32.gmra.mrb[0].mxu0 %v1868
        %v2191 = vpop.f32.mrb[0].mxu0
        %v2192 = vadd.f32 0.0, %v2191
        %v2193 = vpop.f32.mrb[0].mxu0
        %2194 = vmatprep.mubr.f32.mxu0 0.0
        %2195 = vmatmul.mubr.f32.gmra.mrb[0].mxu0 %v1871
        %v2196 = vpop.f32.mrb[0].mxu0
        %v2197 = vadd.f32 0.0, %v2196
        %v2198 = vpop.f32.mrb[0].mxu0
        %2199 = vmatprep.mubr.f32.mxu0 0.0
        %2200 = vmatmul.mubr.f32.gmra.mrb[0].mxu0 %v1874
        %v2201 = vpop.f32.mrb[0].mxu0
        %v2202 = vadd.f32 0.0, %v2201
        %v2203 = vpop.f32.mrb[0].mxu0
        %2204 = vmatprep.mubr.f32.mxu0 0.0
        %2205 = vmatmul.mubr.f32.gmra.mrb[0].mxu0 %v1877
        %v2206 = vpop.f32.mrb[0].mxu0
        %v2207 = vadd.f32 0.0, %v2206
        %v2208 = vpop.f32.mrb[0].mxu0
        %2209 = vmatprep.mubr.f32.mxu0 0.0
        %2210 = vmatmul.mubr.f32.gmra.mrb[0].mxu0 %v1880
        %v2211 = vpop.f32.mrb[0].mxu0
        %v2212 = vadd.f32 0.0, %v2211
        %v2213 = vpop.f32.mrb[0].mxu0
        %2214 = vmatprep.mubr.f32.mxu0 0.0
        %2215 = vmatmul.mubr.f32.gmra.mrb[0].mxu0 %v1883
        %v2216 = vpop.f32.mrb[0].mxu0
        %v2217 = vadd.f32 0.0, %v2216
        %v2218 = vpop.f32.mrb[0].mxu0
        %2219 = vmatprep.mubr.f32.mxu0 0.0
        %2220 = vmatmul.mubr.f32.gmra.mrb[0].mxu0 %v1886
        %v2221 = vpop.f32.mrb[0].mxu0
        %v2222 = vadd.f32 0.0, %v2221
        %v2223 = vpop.f32.mrb[0].mxu0
        %2224 = vmatprep.mubr.f32.mxu0 0.0
        %2225 = vmatmul.mubr.f32.gmra.mrb[0].mxu0 %v1889
        %v2226 = vpop.f32.mrb[0].mxu0
        %v2227 = vadd.f32 0.0, %v2226
        %v2228 = vpop.f32.mrb[0].mxu0
        %2229 = vmatprep.mubr.f32.mxu0 0.0
        %2230 = vmatmul.mubr.f32.gmra.mrb[0].mxu0 %v1892
        %v2231 = vpop.f32.mrb[0].mxu0
        %v2232 = vadd.f32 0.0, %v2231
        %v2233 = vpop.f32.mrb[0].mxu0
        %2234 = vmatprep.mubr.f32.mxu0 0.0
        %2235 = vmatmul.mubr.f32.gmra.mrb[0].mxu0 %v1895
        %v2236 = vpop.f32.mrb[0].mxu0
        %v2237 = vadd.f32 0.0, %v2236
        %v2238 = vpop.f32.mrb[0].mxu0
        %2239 = vmatprep.mubr.f32.mxu0 0.0
        %2240 = vmatmul.mubr.f32.gmra.mrb[0].mxu0 %v1898
        %v2241 = vpop.f32.mrb[0].mxu0
        %v2242 = vadd.f32 0.0, %v2241
        %v2243 = vpop.f32.mrb[0].mxu0
        %2244 = vmatprep.mubr.f32.mxu0 0.0
        %2245 = vmatmul.mubr.f32.gmra.mrb[0].mxu0 %v1901
        %v2246 = vpop.f32.mrb[0].mxu0
        %v2247 = vadd.f32 0.0, %v2246
        %v2248 = vpop.f32.mrb[0].mxu0
        %2249 = vmatprep.mubr.f32.mxu0 0.0
        %2250 = vmatmul.mubr.f32.gmra.mrb[0].mxu0 %v1904
        %v2251 = vpop.f32.mrb[0].mxu0
        %v2252 = vadd.f32 0.0, %v2251
        %v2253 = vpop.f32.mrb[0].mxu0
        %2254 = vmatprep.mubr.f32.mxu0 0.0
        %2255 = vmatmul.mubr.f32.gmra.mrb[0].mxu0 %v1907
        %v2256 = vpop.f32.mrb[0].mxu0
        %v2257 = vadd.f32 0.0, %v2256
        %v2258 = vpop.f32.mrb[0].mxu0
        %2259 = vmatprep.mubr.f32.mxu0 0.0
        %2260 = vmatmul.mubr.f32.gmra.mrb[0].mxu0 %v1910
        %v2261 = vpop.f32.mrb[0].mxu0
        %v2262 = vadd.f32 0.0, %v2261
        %v2263 = vpop.f32.mrb[0].mxu0
        %2264 = vmatprep.mubr.f32.mxu0 0.0
        %2265 = vmatmul.mubr.f32.gmra.mrb[0].mxu0 %v1913
        %v2266 = vpop.f32.mrb[0].mxu0
        %v2267 = vadd.f32 0.0, %v2266
        %v2268 = vpop.f32.mrb[0].mxu0
        %2269 = vmatprep.mubr.f32.mxu0 0.0
        %2270 = vmatmul.mubr.f32.gmra.mrb[0].mxu0 %v1916
        %v2271 = vpop.f32.mrb[0].mxu0
        %v2272 = vadd.f32 0.0, %v2271
        %v2273 = vpop.f32.mrb[0].mxu0
        %2274 = vmatprep.mubr.f32.mxu0 0.0
        %2275 = vmatmul.mubr.f32.gmra.mrb[0].mxu0 %v1919
        %v2276 = vpop.f32.mrb[0].mxu0
        %v2277 = vadd.f32 0.0, %v2276
        %v2278 = vpop.f32.mrb[0].mxu0
        %2279 = vmatprep.mubr.f32.mxu0 0.0
        %2280 = vmatmul.mubr.f32.gmra.mrb[0].mxu0 %v1922
        %v2281 = vpop.f32.mrb[0].mxu0
        %v2282 = vadd.f32 0.0, %v2281
        %v2283 = vpop.f32.mrb[0].mxu0
        %2284 = vmatprep.mubr.f32.mxu0 0.0
        %2285 = vmatmul.mubr.f32.gmra.mrb[0].mxu0 %v1925
        %v2286 = vpop.f32.mrb[0].mxu0
        %v2287 = vadd.f32 0.0, %v2286
        %v2288 = vpop.f32.mrb[0].mxu0
        %2289 = vmatprep.mubr.f32.mxu0 0.0
        %2290 = vmatmul.mubr.f32.gmra.mrb[0].mxu0 %v1928
        %v2291 = vpop.f32.mrb[0].mxu0
        %v2292 = vadd.f32 0.0, %v2291
        %v2293 = vpop.f32.mrb[0].mxu0
        %2294 = vmatprep.mubr.f32.mxu0 0.0
        %2295 = vmatmul.mubr.f32.gmra.mrb[0].mxu0 %v1931
        %v2296 = vpop.f32.mrb[0].mxu0
        %v2297 = vadd.f32 0.0, %v2296
        %v2298 = vpop.f32.mrb[0].mxu0
        %2299 = vmatprep.mubr.f32.mxu0 0.0
        %2300 = vmatmul.mubr.f32.gmra.mrb[0].mxu0 %v1934
        %v2301 = vpop.f32.mrb[0].mxu0
        %v2302 = vadd.f32 0.0, %v2301
        %v2303 = vpop.f32.mrb[0].mxu0
        %2304 = vmatprep.mubr.f32.mxu0 0.0
        %2305 = vmatmul.mubr.f32.gmra.mrb[0].mxu0 %v1937
        %v2306 = vpop.f32.mrb[0].mxu0
        %v2307 = vadd.f32 0.0, %v2306
        %v2308 = vpop.f32.mrb[0].mxu0
        %2309 = vmatprep.mubr.f32.mxu0 0.0
        %2310 = vmatmul.mubr.f32.gmra.mrb[0].mxu0 %v1940
        %v2311 = vpop.f32.mrb[0].mxu0
        %v2312 = vadd.f32 0.0, %v2311
        %v2313 = vpop.f32.mrb[0].mxu0
        %2314 = vmatprep.mubr.f32.mxu0 0.0
        %2315 = vmatmul.mubr.f32.gmra.mrb[0].mxu0 %v1943
        %v2316 = vpop.f32.mrb[0].mxu0
        %v2317 = vadd.f32 0.0, %v2316
        %v2318 = vpop.f32.mrb[0].mxu0
        %2319 = vmatprep.mubr.f32.mxu0 0.0
        %2320 = vmatmul.mubr.f32.gmra.mrb[0].mxu0 %v1946
        %v2321 = vpop.f32.mrb[0].mxu0
        %v2322 = vadd.f32 0.0, %v2321
        %v2323 = vpop.f32.mrb[0].mxu0
        %2324 = vmatprep.mubr.f32.mxu0 0.0
        %2325 = vmatmul.mubr.f32.gmra.mrb[0].mxu0 %v1949
        %v2326 = vpop.f32.mrb[0].mxu0
        %v2327 = vadd.f32 0.0, %v2326
        %v2328 = vpop.f32.mrb[0].mxu0
        %2329 = vmatprep.mubr.f32.mxu0 0.0
        %2330 = vmatmul.mubr.f32.gmra.mrb[0].mxu0 %v1952
        %v2331 = vpop.f32.mrb[0].mxu0
        %v2332 = vadd.f32 0.0, %v2331
        %v2333 = vpop.f32.mrb[0].mxu0
        %2334 = vmatprep.mubr.f32.mxu0 0.0
        %2335 = vmatmul.mubr.f32.gmra.mrb[0].mxu0 %v1955
        %v2336 = vpop.f32.mrb[0].mxu0
        %v2337 = vadd.f32 0.0, %v2336
        %v2338 = vpop.f32.mrb[0].mxu0
        %2339 = vmatprep.mubr.f32.mxu0 0.0
        %2340 = vmatmul.mubr.f32.gmra.mrb[0].mxu0 %v1958
        %v2341 = vpop.f32.mrb[0].mxu0
        %v2342 = vadd.f32 0.0, %v2341
        %v2343 = vpop.f32.mrb[0].mxu0
        %2344 = vdwg.mxu0
        %vm2345 = vcmask 261120
        %v2347 = vsel %vm2345, %v1696, 0
        %v2350 = vsel %vm2345, %v1697, 0
        %v2353 = vsel %vm2345, %v1698, 0
        %v2356 = vsel %vm2345, %v1699, 0
        %v2359 = vsel %vm2345, %v1700, 0
        %v2362 = vsel %vm2345, %v1701, 0
        %v2365 = vsel %vm2345, %v1702, 0
        %v2368 = vsel %vm2345, %v1703, 0
        %v2371 = vsel %vm2345, %v1704, 0
        %v2374 = vsel %vm2345, %v1705, 0
        %v2377 = vsel %vm2345, %v1706, 0
        %v2380 = vsel %vm2345, %v1707, 0
        %v2383 = vsel %vm2345, %v1708, 0
        %v2386 = vsel %vm2345, %v1709, 0
        %v2389 = vsel %vm2345, %v1710, 0
        %v2392 = vsel %vm2345, %v1711, 0
        %v2395 = vsel %vm2345, %v1712, 0
        %v2398 = vsel %vm2345, %v1713, 0
        %v2401 = vsel %vm2345, %v1714, 0
        %v2404 = vsel %vm2345, %v1715, 0
        %v2407 = vsel %vm2345, %v1716, 0
        %v2410 = vsel %vm2345, %v1717, 0
        %v2413 = vsel %vm2345, %v1718, 0
        %v2416 = vsel %vm2345, %v1719, 0
        %v2419 = vsel %vm2345, %v1720, 0
        %v2422 = vsel %vm2345, %v1721, 0
        %v2425 = vsel %vm2345, %v1722, 0
        %v2428 = vsel %vm2345, %v1723, 0
        %v2431 = vsel %vm2345, %v1724, 0
        %v2434 = vsel %vm2345, %v1725, 0
        %v2437 = vsel %vm2345, %v1726, 0
        %v2440 = vsel %vm2345, %v1727, 0
        %v2443 = vsel %vm2345, %v1728, 0
        %v2446 = vsel %vm2345, %v1729, 0
        %v2449 = vsel %vm2345, %v1730, 0
        %v2452 = vsel %vm2345, %v1731, 0
        %v2455 = vsel %vm2345, %v1732, 0
        %v2458 = vsel %vm2345, %v1733, 0
        %v2461 = vsel %vm2345, %v1734, 0
        %v2464 = vsel %vm2345, %v1735, 0
        %v2467 = vsel %vm2345, %v1736, 0
        %v2470 = vsel %vm2345, %v1737, 0
        %v2473 = vsel %vm2345, %v1738, 0
        %v2476 = vsel %vm2345, %v1739, 0
        %v2479 = vsel %vm2345, %v1740, 0
        %v2482 = vsel %vm2345, %v1741, 0
        %v2485 = vsel %vm2345, %v1742, 0
        %v2488 = vsel %vm2345, %v1743, 0
        %v2491 = vsel %vm2345, %v1744, 0
        %v2494 = vsel %vm2345, %v1745, 0
        %v2497 = vsel %vm2345, %v1746, 0
        %v2500 = vsel %vm2345, %v1747, 0
        %v2503 = vsel %vm2345, %v1748, 0
        %v2506 = vsel %vm2345, %v1749, 0
        %v2509 = vsel %vm2345, %v1750, 0
        %v2512 = vsel %vm2345, %v1751, 0
        %v2515 = vsel %vm2345, %v1752, 0
        %v2518 = vsel %vm2345, %v1753, 0
        %v2521 = vsel %vm2345, %v1754, 0
        %v2524 = vsel %vm2345, %v1755, 0
        %v2527 = vsel %vm2345, %v1756, 0
        %v2530 = vsel %vm2345, %v1757, 0
        %v2533 = vsel %vm2345, %v1758, 0
        %v2536 = vsel %vm2345, %v1759, 0
        %2538 = vmatprep.subr.mxu0 0.0
        %2539 = vmatpush1.msra.mxu0 %v1760
        %2540 = vmatprep.subr.mxu0 0.0
        %2541 = vmatpush1.msra.mxu0 %v1761
        %2542 = vmatprep.subr.mxu0 0.0
        %2543 = vmatpush1.msra.mxu0 %v1762
        %2544 = vmatprep.subr.mxu0 0.0
        %2545 = vmatpush1.msra.mxu0 %v1763
        %2546 = vmatprep.subr.mxu0 0.0
        %2547 = vmatpush1.msra.mxu0 0.0
        %2548 = vmatprep.subr.mxu0 0.0
        %2549 = vmatpush1.msra.mxu0 0.0
        %2550 = vmatprep.subr.mxu0 0.0
        %2551 = vmatpush1.msra.mxu0 0.0
        %2552 = vmatprep.subr.mxu0 0.0
        %2553 = vmatpush1.msra.mxu0 0.0
        %2554 = vmatprep.subr.mxu0 0.0
        %2555 = vmatpush1.msra.mxu0 0.0
        %2556 = vmatprep.subr.mxu0 0.0
        %2557 = vmatpush1.msra.mxu0 0.0
        %2558 = vmatprep.subr.mxu0 0.0
        %2559 = vmatpush1.msra.mxu0 0.0
        %2560 = vmatprep.subr.mxu0 0.0
        %2561 = vmatpush1.msra.mxu0 0.0
        %2562 = vmatprep.subr.mxu0 0.0
        %2563 = vmatpush1.msra.mxu0 0.0
        %2564 = vmatprep.subr.mxu0 0.0
        %2565 = vmatpush1.msra.mxu0 0.0
        %2566 = vmatprep.subr.mxu0 0.0
        %2567 = vmatpush1.msra.mxu0 0.0
        %2568 = vmatprep.subr.mxu0 0.0
        %2569 = vmatpush1.msra.mxu0 0.0
        %2570 = vmatprep.subr.mxu0 0.0
        %2571 = vmatpush1.msra.mxu0 0.0
        %2572 = vmatprep.subr.mxu0 0.0
        %2573 = vmatpush1.msra.mxu0 0.0
        %2574 = vmatprep.subr.mxu0 0.0
        %2575 = vmatpush1.msra.mxu0 0.0
        %2576 = vmatprep.subr.mxu0 0.0
        %2577 = vmatpush1.msra.mxu0 0.0
        %2578 = vmatprep.subr.mxu0 0.0
        %2579 = vmatpush1.msra.mxu0 0.0
        %2580 = vmatprep.subr.mxu0 0.0
        %2581 = vmatpush1.msra.mxu0 0.0
        %2582 = vmatprep.subr.mxu0 0.0
        %2583 = vmatpush1.msra.mxu0 0.0
        %2584 = vmatprep.subr.mxu0 0.0
        %2585 = vmatpush1.msra.mxu0 0.0
        %2586 = vmatprep.subr.mxu0 0.0
        %2587 = vmatpush1.msra.mxu0 0.0
        %2588 = vmatprep.subr.mxu0 0.0
        %2589 = vmatpush1.msra.mxu0 0.0
        %2590 = vmatprep.subr.mxu0 0.0
        %2591 = vmatpush1.msra.mxu0 0.0
        %2592 = vmatprep.subr.mxu0 0.0
        %2593 = vmatpush1.msra.mxu0 0.0
        %2594 = vmatprep.subr.mxu0 0.0
        %2595 = vmatpush1.msra.mxu0 0.0
        %2596 = vmatprep.subr.mxu0 0.0
        %2597 = vmatpush1.msra.mxu0 0.0
        %2598 = vmatprep.subr.mxu0 0.0
        %2599 = vmatpush1.msra.mxu0 0.0
        %2600 = vmatprep.subr.mxu0 0.0
        %2601 = vmatpush1.msra.mxu0 0.0
        %2602 = vmatprep.mubr.f32.mxu0 0.0
        %2603 = vmatmul.mubr.f32.gmra.mrb[0].mxu0 %v2347
        %v2604 = vpop.f32.mrb[0].mxu0
        %v2605 = vadd.f32 %v2027, %v2604
        %v2606 = vpop.f32.mrb[0].mxu0
        %2607 = vmatprep.mubr.f32.mxu0 0.0
        %2608 = vmatmul.mubr.f32.gmra.mrb[0].mxu0 %v2350
        %v2609 = vpop.f32.mrb[0].mxu0
        %v2610 = vadd.f32 %v2032, %v2609
        %v2611 = vpop.f32.mrb[0].mxu0
        %2612 = vmatprep.mubr.f32.mxu0 0.0
        %2613 = vmatmul.mubr.f32.gmra.mrb[0].mxu0 %v2353
        %v2614 = vpop.f32.mrb[0].mxu0
        %v2615 = vadd.f32 %v2037, %v2614
        %v2616 = vpop.f32.mrb[0].mxu0
        %2617 = vmatprep.mubr.f32.mxu0 0.0
        %2618 = vmatmul.mubr.f32.gmra.mrb[0].mxu0 %v2356
        %v2619 = vpop.f32.mrb[0].mxu0
        %v2620 = vadd.f32 %v2042, %v2619
        %v2621 = vpop.f32.mrb[0].mxu0
        %2622 = vmatprep.mubr.f32.mxu0 0.0
        %2623 = vmatmul.mubr.f32.gmra.mrb[0].mxu0 %v2359
        %v2624 = vpop.f32.mrb[0].mxu0
        %v2625 = vadd.f32 %v2047, %v2624
        %v2626 = vpop.f32.mrb[0].mxu0
        %2627 = vmatprep.mubr.f32.mxu0 0.0
        %2628 = vmatmul.mubr.f32.gmra.mrb[0].mxu0 %v2362
        %v2629 = vpop.f32.mrb[0].mxu0
        %v2630 = vadd.f32 %v2052, %v2629
        %v2631 = vpop.f32.mrb[0].mxu0
        %2632 = vmatprep.mubr.f32.mxu0 0.0
        %2633 = vmatmul.mubr.f32.gmra.mrb[0].mxu0 %v2365
        %v2634 = vpop.f32.mrb[0].mxu0
        %v2635 = vadd.f32 %v2057, %v2634
        %v2636 = vpop.f32.mrb[0].mxu0
        %2637 = vmatprep.mubr.f32.mxu0 0.0
        %2638 = vmatmul.mubr.f32.gmra.mrb[0].mxu0 %v2368
        %v2639 = vpop.f32.mrb[0].mxu0
        %v2640 = vadd.f32 %v2062, %v2639
        %v2641 = vpop.f32.mrb[0].mxu0
        %2642 = vmatprep.mubr.f32.mxu0 0.0
        %2643 = vmatmul.mubr.f32.gmra.mrb[0].mxu0 %v2371
        %v2644 = vpop.f32.mrb[0].mxu0
        %v2645 = vadd.f32 %v2067, %v2644
        %v2646 = vpop.f32.mrb[0].mxu0
        %2647 = vmatprep.mubr.f32.mxu0 0.0
        %2648 = vmatmul.mubr.f32.gmra.mrb[0].mxu0 %v2374
        %v2649 = vpop.f32.mrb[0].mxu0
        %v2650 = vadd.f32 %v2072, %v2649
        %v2651 = vpop.f32.mrb[0].mxu0
        %2652 = vmatprep.mubr.f32.mxu0 0.0
        %2653 = vmatmul.mubr.f32.gmra.mrb[0].mxu0 %v2377
        %v2654 = vpop.f32.mrb[0].mxu0
        %v2655 = vadd.f32 %v2077, %v2654
        %v2656 = vpop.f32.mrb[0].mxu0
        %2657 = vmatprep.mubr.f32.mxu0 0.0
        %2658 = vmatmul.mubr.f32.gmra.mrb[0].mxu0 %v2380
        %v2659 = vpop.f32.mrb[0].mxu0
        %v2660 = vadd.f32 %v2082, %v2659
        %v2661 = vpop.f32.mrb[0].mxu0
        %2662 = vmatprep.mubr.f32.mxu0 0.0
        %2663 = vmatmul.mubr.f32.gmra.mrb[0].mxu0 %v2383
        %v2664 = vpop.f32.mrb[0].mxu0
        %v2665 = vadd.f32 %v2087, %v2664
        %v2666 = vpop.f32.mrb[0].mxu0
        %2667 = vmatprep.mubr.f32.mxu0 0.0
        %2668 = vmatmul.mubr.f32.gmra.mrb[0].mxu0 %v2386
        %v2669 = vpop.f32.mrb[0].mxu0
        %v2670 = vadd.f32 %v2092, %v2669
        %v2671 = vpop.f32.mrb[0].mxu0
        %2672 = vmatprep.mubr.f32.mxu0 0.0
        %2673 = vmatmul.mubr.f32.gmra.mrb[0].mxu0 %v2389
        %v2674 = vpop.f32.mrb[0].mxu0
        %v2675 = vadd.f32 %v2097, %v2674
        %v2676 = vpop.f32.mrb[0].mxu0
        %2677 = vmatprep.mubr.f32.mxu0 0.0
        %2678 = vmatmul.mubr.f32.gmra.mrb[0].mxu0 %v2392
        %v2679 = vpop.f32.mrb[0].mxu0
        %v2680 = vadd.f32 %v2102, %v2679
        %v2681 = vpop.f32.mrb[0].mxu0
        %2682 = vmatprep.mubr.f32.mxu0 0.0
        %2683 = vmatmul.mubr.f32.gmra.mrb[0].mxu0 %v2395
        %v2684 = vpop.f32.mrb[0].mxu0
        %v2685 = vadd.f32 %v2107, %v2684
        %v2686 = vpop.f32.mrb[0].mxu0
        %2687 = vmatprep.mubr.f32.mxu0 0.0
        %2688 = vmatmul.mubr.f32.gmra.mrb[0].mxu0 %v2398
        %v2689 = vpop.f32.mrb[0].mxu0
        %v2690 = vadd.f32 %v2112, %v2689
        %v2691 = vpop.f32.mrb[0].mxu0
        %2692 = vmatprep.mubr.f32.mxu0 0.0
        %2693 = vmatmul.mubr.f32.gmra.mrb[0].mxu0 %v2401
        %v2694 = vpop.f32.mrb[0].mxu0
        %v2695 = vadd.f32 %v2117, %v2694
        %v2696 = vpop.f32.mrb[0].mxu0
        %2697 = vmatprep.mubr.f32.mxu0 0.0
        %2698 = vmatmul.mubr.f32.gmra.mrb[0].mxu0 %v2404
        %v2699 = vpop.f32.mrb[0].mxu0
        %v2700 = vadd.f32 %v2122, %v2699
        %v2701 = vpop.f32.mrb[0].mxu0
        %2702 = vmatprep.mubr.f32.mxu0 0.0
        %2703 = vmatmul.mubr.f32.gmra.mrb[0].mxu0 %v2407
        %v2704 = vpop.f32.mrb[0].mxu0
        %v2705 = vadd.f32 %v2127, %v2704
        %v2706 = vpop.f32.mrb[0].mxu0
        %2707 = vmatprep.mubr.f32.mxu0 0.0
        %2708 = vmatmul.mubr.f32.gmra.mrb[0].mxu0 %v2410
        %v2709 = vpop.f32.mrb[0].mxu0
        %v2710 = vadd.f32 %v2132, %v2709
        %v2711 = vpop.f32.mrb[0].mxu0
        %2712 = vmatprep.mubr.f32.mxu0 0.0
        %2713 = vmatmul.mubr.f32.gmra.mrb[0].mxu0 %v2413
        %v2714 = vpop.f32.mrb[0].mxu0
        %v2715 = vadd.f32 %v2137, %v2714
        %v2716 = vpop.f32.mrb[0].mxu0
        %2717 = vmatprep.mubr.f32.mxu0 0.0
        %2718 = vmatmul.mubr.f32.gmra.mrb[0].mxu0 %v2416
        %v2719 = vpop.f32.mrb[0].mxu0
        %v2720 = vadd.f32 %v2142, %v2719
        %v2721 = vpop.f32.mrb[0].mxu0
        %2722 = vmatprep.mubr.f32.mxu0 0.0
        %2723 = vmatmul.mubr.f32.gmra.mrb[0].mxu0 %v2419
        %v2724 = vpop.f32.mrb[0].mxu0
        %v2725 = vadd.f32 %v2147, %v2724
        %v2726 = vpop.f32.mrb[0].mxu0
        %2727 = vmatprep.mubr.f32.mxu0 0.0
        %2728 = vmatmul.mubr.f32.gmra.mrb[0].mxu0 %v2422
        %v2729 = vpop.f32.mrb[0].mxu0
        %v2730 = vadd.f32 %v2152, %v2729
        %v2731 = vpop.f32.mrb[0].mxu0
        %2732 = vmatprep.mubr.f32.mxu0 0.0
        %2733 = vmatmul.mubr.f32.gmra.mrb[0].mxu0 %v2425
        %v2734 = vpop.f32.mrb[0].mxu0
        %v2735 = vadd.f32 %v2157, %v2734
        %v2736 = vpop.f32.mrb[0].mxu0
        %2737 = vmatprep.mubr.f32.mxu0 0.0
        %2738 = vmatmul.mubr.f32.gmra.mrb[0].mxu0 %v2428
        %v2739 = vpop.f32.mrb[0].mxu0
        %v2740 = vadd.f32 %v2162, %v2739
        %v2741 = vpop.f32.mrb[0].mxu0
        %2742 = vmatprep.mubr.f32.mxu0 0.0
        %2743 = vmatmul.mubr.f32.gmra.mrb[0].mxu0 %v2431
        %v2744 = vpop.f32.mrb[0].mxu0
        %v2745 = vadd.f32 %v2167, %v2744
        %v2746 = vpop.f32.mrb[0].mxu0
        %2747 = vmatprep.mubr.f32.mxu0 0.0
        %2748 = vmatmul.mubr.f32.gmra.mrb[0].mxu0 %v2434
        %v2749 = vpop.f32.mrb[0].mxu0
        %v2750 = vadd.f32 %v2172, %v2749
        %v2751 = vpop.f32.mrb[0].mxu0
        %2752 = vmatprep.mubr.f32.mxu0 0.0
        %2753 = vmatmul.mubr.f32.gmra.mrb[0].mxu0 %v2437
        %v2754 = vpop.f32.mrb[0].mxu0
        %v2755 = vadd.f32 %v2177, %v2754
        %v2756 = vpop.f32.mrb[0].mxu0
        %2757 = vmatprep.mubr.f32.mxu0 0.0
        %2758 = vmatmul.mubr.f32.gmra.mrb[0].mxu0 %v2440
        %v2759 = vpop.f32.mrb[0].mxu0
        %v2760 = vadd.f32 %v2182, %v2759
        %v2761 = vpop.f32.mrb[0].mxu0
        %2762 = vmatprep.mubr.f32.mxu0 0.0
        %2763 = vmatmul.mubr.f32.gmra.mrb[0].mxu0 %v2443
        %v2764 = vpop.f32.mrb[0].mxu0
        %v2765 = vadd.f32 %v2187, %v2764
        %v2766 = vpop.f32.mrb[0].mxu0
        %2767 = vmatprep.mubr.f32.mxu0 0.0
        %2768 = vmatmul.mubr.f32.gmra.mrb[0].mxu0 %v2446
        %v2769 = vpop.f32.mrb[0].mxu0
        %v2770 = vadd.f32 %v2192, %v2769
        %v2771 = vpop.f32.mrb[0].mxu0
        %2772 = vmatprep.mubr.f32.mxu0 0.0
        %2773 = vmatmul.mubr.f32.gmra.mrb[0].mxu0 %v2449
        %v2774 = vpop.f32.mrb[0].mxu0
        %v2775 = vadd.f32 %v2197, %v2774
        %v2776 = vpop.f32.mrb[0].mxu0
        %2777 = vmatprep.mubr.f32.mxu0 0.0
        %2778 = vmatmul.mubr.f32.gmra.mrb[0].mxu0 %v2452
        %v2779 = vpop.f32.mrb[0].mxu0
        %v2780 = vadd.f32 %v2202, %v2779
        %v2781 = vpop.f32.mrb[0].mxu0
        %2782 = vmatprep.mubr.f32.mxu0 0.0
        %2783 = vmatmul.mubr.f32.gmra.mrb[0].mxu0 %v2455
        %v2784 = vpop.f32.mrb[0].mxu0
        %v2785 = vadd.f32 %v2207, %v2784
        %v2786 = vpop.f32.mrb[0].mxu0
        %2787 = vmatprep.mubr.f32.mxu0 0.0
        %2788 = vmatmul.mubr.f32.gmra.mrb[0].mxu0 %v2458
        %v2789 = vpop.f32.mrb[0].mxu0
        %v2790 = vadd.f32 %v2212, %v2789
        %v2791 = vpop.f32.mrb[0].mxu0
        %2792 = vmatprep.mubr.f32.mxu0 0.0
        %2793 = vmatmul.mubr.f32.gmra.mrb[0].mxu0 %v2461
        %v2794 = vpop.f32.mrb[0].mxu0
        %v2795 = vadd.f32 %v2217, %v2794
        %v2796 = vpop.f32.mrb[0].mxu0
        %2797 = vmatprep.mubr.f32.mxu0 0.0
        %2798 = vmatmul.mubr.f32.gmra.mrb[0].mxu0 %v2464
        %v2799 = vpop.f32.mrb[0].mxu0
        %v2800 = vadd.f32 %v2222, %v2799
        %v2801 = vpop.f32.mrb[0].mxu0
        %2802 = vmatprep.mubr.f32.mxu0 0.0
        %2803 = vmatmul.mubr.f32.gmra.mrb[0].mxu0 %v2467
        %v2804 = vpop.f32.mrb[0].mxu0
        %v2805 = vadd.f32 %v2227, %v2804
        %v2806 = vpop.f32.mrb[0].mxu0
        %2807 = vmatprep.mubr.f32.mxu0 0.0
        %2808 = vmatmul.mubr.f32.gmra.mrb[0].mxu0 %v2470
        %v2809 = vpop.f32.mrb[0].mxu0
        %v2810 = vadd.f32 %v2232, %v2809
        %v2811 = vpop.f32.mrb[0].mxu0
        %2812 = vmatprep.mubr.f32.mxu0 0.0
        %2813 = vmatmul.mubr.f32.gmra.mrb[0].mxu0 %v2473
        %v2814 = vpop.f32.mrb[0].mxu0
        %v2815 = vadd.f32 %v2237, %v2814
        %v2816 = vpop.f32.mrb[0].mxu0
        %2817 = vmatprep.mubr.f32.mxu0 0.0
        %2818 = vmatmul.mubr.f32.gmra.mrb[0].mxu0 %v2476
        %v2819 = vpop.f32.mrb[0].mxu0
        %v2820 = vadd.f32 %v2242, %v2819
        %v2821 = vpop.f32.mrb[0].mxu0
        %2822 = vmatprep.mubr.f32.mxu0 0.0
        %2823 = vmatmul.mubr.f32.gmra.mrb[0].mxu0 %v2479
        %v2824 = vpop.f32.mrb[0].mxu0
        %v2825 = vadd.f32 %v2247, %v2824
        %v2826 = vpop.f32.mrb[0].mxu0
        %2827 = vmatprep.mubr.f32.mxu0 0.0
        %2828 = vmatmul.mubr.f32.gmra.mrb[0].mxu0 %v2482
        %v2829 = vpop.f32.mrb[0].mxu0
        %v2830 = vadd.f32 %v2252, %v2829
        %v2831 = vpop.f32.mrb[0].mxu0
        %2832 = vmatprep.mubr.f32.mxu0 0.0
        %2833 = vmatmul.mubr.f32.gmra.mrb[0].mxu0 %v2485
        %v2834 = vpop.f32.mrb[0].mxu0
        %v2835 = vadd.f32 %v2257, %v2834
        %v2836 = vpop.f32.mrb[0].mxu0
        %2837 = vmatprep.mubr.f32.mxu0 0.0
        %2838 = vmatmul.mubr.f32.gmra.mrb[0].mxu0 %v2488
        %v2839 = vpop.f32.mrb[0].mxu0
        %v2840 = vadd.f32 %v2262, %v2839
        %v2841 = vpop.f32.mrb[0].mxu0
        %2842 = vmatprep.mubr.f32.mxu0 0.0
        %2843 = vmatmul.mubr.f32.gmra.mrb[0].mxu0 %v2491
        %v2844 = vpop.f32.mrb[0].mxu0
        %v2845 = vadd.f32 %v2267, %v2844
        %v2846 = vpop.f32.mrb[0].mxu0
        %2847 = vmatprep.mubr.f32.mxu0 0.0
        %2848 = vmatmul.mubr.f32.gmra.mrb[0].mxu0 %v2494
        %v2849 = vpop.f32.mrb[0].mxu0
        %v2850 = vadd.f32 %v2272, %v2849
        %v2851 = vpop.f32.mrb[0].mxu0
        %2852 = vmatprep.mubr.f32.mxu0 0.0
        %2853 = vmatmul.mubr.f32.gmra.mrb[0].mxu0 %v2497
        %v2854 = vpop.f32.mrb[0].mxu0
        %v2855 = vadd.f32 %v2277, %v2854
        %v2856 = vpop.f32.mrb[0].mxu0
        %2857 = vmatprep.mubr.f32.mxu0 0.0
        %2858 = vmatmul.mubr.f32.gmra.mrb[0].mxu0 %v2500
        %v2859 = vpop.f32.mrb[0].mxu0
        %v2860 = vadd.f32 %v2282, %v2859
        %v2861 = vpop.f32.mrb[0].mxu0
        %2862 = vmatprep.mubr.f32.mxu0 0.0
        %2863 = vmatmul.mubr.f32.gmra.mrb[0].mxu0 %v2503
        %v2864 = vpop.f32.mrb[0].mxu0
        %v2865 = vadd.f32 %v2287, %v2864
        %v2866 = vpop.f32.mrb[0].mxu0
        %2867 = vmatprep.mubr.f32.mxu0 0.0
        %2868 = vmatmul.mubr.f32.gmra.mrb[0].mxu0 %v2506
        %v2869 = vpop.f32.mrb[0].mxu0
        %v2870 = vadd.f32 %v2292, %v2869
        %v2871 = vpop.f32.mrb[0].mxu0
        %2872 = vmatprep.mubr.f32.mxu0 0.0
        %2873 = vmatmul.mubr.f32.gmra.mrb[0].mxu0 %v2509
        %v2874 = vpop.f32.mrb[0].mxu0
        %v2875 = vadd.f32 %v2297, %v2874
        %v2876 = vpop.f32.mrb[0].mxu0
        %2877 = vmatprep.mubr.f32.mxu0 0.0
        %2878 = vmatmul.mubr.f32.gmra.mrb[0].mxu0 %v2512
        %v2879 = vpop.f32.mrb[0].mxu0
        %v2880 = vadd.f32 %v2302, %v2879
        %v2881 = vpop.f32.mrb[0].mxu0
        %2882 = vmatprep.mubr.f32.mxu0 0.0
        %2883 = vmatmul.mubr.f32.gmra.mrb[0].mxu0 %v2515
        %v2884 = vpop.f32.mrb[0].mxu0
        %v2885 = vadd.f32 %v2307, %v2884
        %v2886 = vpop.f32.mrb[0].mxu0
        %2887 = vmatprep.mubr.f32.mxu0 0.0
        %2888 = vmatmul.mubr.f32.gmra.mrb[0].mxu0 %v2518
        %v2889 = vpop.f32.mrb[0].mxu0
        %v2890 = vadd.f32 %v2312, %v2889
        %v2891 = vpop.f32.mrb[0].mxu0
        %2892 = vmatprep.mubr.f32.mxu0 0.0
        %2893 = vmatmul.mubr.f32.gmra.mrb[0].mxu0 %v2521
        %v2894 = vpop.f32.mrb[0].mxu0
        %v2895 = vadd.f32 %v2317, %v2894
        %v2896 = vpop.f32.mrb[0].mxu0
        %2897 = vmatprep.mubr.f32.mxu0 0.0
        %2898 = vmatmul.mubr.f32.gmra.mrb[0].mxu0 %v2524
        %v2899 = vpop.f32.mrb[0].mxu0
        %v2900 = vadd.f32 %v2322, %v2899
        %v2901 = vpop.f32.mrb[0].mxu0
        %2902 = vmatprep.mubr.f32.mxu0 0.0
        %2903 = vmatmul.mubr.f32.gmra.mrb[0].mxu0 %v2527
        %v2904 = vpop.f32.mrb[0].mxu0
        %v2905 = vadd.f32 %v2327, %v2904
        %v2906 = vpop.f32.mrb[0].mxu0
        %2907 = vmatprep.mubr.f32.mxu0 0.0
        %2908 = vmatmul.mubr.f32.gmra.mrb[0].mxu0 %v2530
        %v2909 = vpop.f32.mrb[0].mxu0
        %v2910 = vadd.f32 %v2332, %v2909
        %v2911 = vpop.f32.mrb[0].mxu0
        %2912 = vmatprep.mubr.f32.mxu0 0.0
        %2913 = vmatmul.mubr.f32.gmra.mrb[0].mxu0 %v2533
        %v2914 = vpop.f32.mrb[0].mxu0
        %v2915 = vadd.f32 %v2337, %v2914
        %v2916 = vpop.f32.mrb[0].mxu0
        %2917 = vmatprep.mubr.f32.mxu0 0.0
        %2918 = vmatmul.mubr.f32.gmra.mrb[0].mxu0 %v2536
        %v2919 = vpop.f32.mrb[0].mxu0
        %v2920 = vadd.f32 %v2342, %v2919
        %v2921 = vpop.f32.mrb[0].mxu0
        %2922 = vdwg.mxu0
        %2923 = vst [vmem:[%s207] sm:$0xff] %v2605
        %2924 = vst [vmem:[%s207 + $0x8] sm:$0xff] %v2610
        %2925 = vst [vmem:[%s207 + $0x10] sm:$0xff] %v2615
        %2926 = vst [vmem:[%s207 + $0x18] sm:$0xff] %v2620
        %2927 = vst [vmem:[%s207 + $0x20] sm:$0xff] %v2625
        %2928 = vst [vmem:[%s207 + $0x28] sm:$0xff] %v2630
        %2929 = vst [vmem:[%s207 + $0x30] sm:$0xff] %v2635
        %2930 = vst [vmem:[%s207 + $0x38] sm:$0xff] %v2640
        %2931 = vst [vmem:[%s207 + $0x40] sm:$0xff] %v2645
        %2932 = vst [vmem:[%s207 + $0x48] sm:$0xff] %v2650
        %2933 = vst [vmem:[%s207 + $0x50] sm:$0xff] %v2655
        %2934 = vst [vmem:[%s207 + $0x58] sm:$0xff] %v2660
        %2935 = vst [vmem:[%s207 + $0x60] sm:$0xff] %v2665
        %2936 = vst [vmem:[%s207 + $0x68] sm:$0xff] %v2670
        %2937 = vst [vmem:[%s207 + $0x70] sm:$0xff] %v2675
        %2938 = vst [vmem:[%s207 + $0x78] sm:$0xff] %v2680
        %2939 = vst [vmem:[%s207 + $0x80] sm:$0xff] %v2685
        %2940 = vst [vmem:[%s207 + $0x88] sm:$0xff] %v2690
        %2941 = vst [vmem:[%s207 + $0x90] sm:$0xff] %v2695
        %2942 = vst [vmem:[%s207 + $0x98] sm:$0xff] %v2700
        %2943 = vst [vmem:[%s207 + $0xa0] sm:$0xff] %v2705
        %2944 = vst [vmem:[%s207 + $0xa8] sm:$0xff] %v2710
        %2945 = vst [vmem:[%s207 + $0xb0] sm:$0xff] %v2715
        %2946 = vst [vmem:[%s207 + $0xb8] sm:$0xff] %v2720
        %2947 = vst [vmem:[%s207 + $0xc0] sm:$0xff] %v2725
        %2948 = vst [vmem:[%s207 + $0xc8] sm:$0xff] %v2730
        %2949 = vst [vmem:[%s207 + $0xd0] sm:$0xff] %v2735
        %2950 = vst [vmem:[%s207 + $0xd8] sm:$0xff] %v2740
        %2951 = vst [vmem:[%s207 + $0xe0] sm:$0xff] %v2745
        %2952 = vst [vmem:[%s207 + $0xe8] sm:$0xff] %v2750
        %2953 = vst [vmem:[%s207 + $0xf0] sm:$0xff] %v2755
        %2954 = vst [vmem:[%s207 + $0xf8] sm:$0xff] %v2760
        %2955 = vst [vmem:[%s207 + $0x100] sm:$0xff] %v2765
        %2956 = vst [vmem:[%s207 + $0x108] sm:$0xff] %v2770
        %2957 = vst [vmem:[%s207 + $0x110] sm:$0xff] %v2775
        %2958 = vst [vmem:[%s207 + $0x118] sm:$0xff] %v2780
        %2959 = vst [vmem:[%s207 + $0x120] sm:$0xff] %v2785
        %2960 = vst [vmem:[%s207 + $0x128] sm:$0xff] %v2790
        %2961 = vst [vmem:[%s207 + $0x130] sm:$0xff] %v2795
        %2962 = vst [vmem:[%s207 + $0x138] sm:$0xff] %v2800
        %2963 = vst [vmem:[%s207 + $0x140] sm:$0xff] %v2805
        %2964 = vst [vmem:[%s207 + $0x148] sm:$0xff] %v2810
        %2965 = vst [vmem:[%s207 + $0x150] sm:$0xff] %v2815
        %2966 = vst [vmem:[%s207 + $0x158] sm:$0xff] %v2820
        %2967 = vst [vmem:[%s207 + $0x160] sm:$0xff] %v2825
        %2968 = vst [vmem:[%s207 + $0x168] sm:$0xff] %v2830
        %2969 = vst [vmem:[%s207 + $0x170] sm:$0xff] %v2835
        %2970 = vst [vmem:[%s207 + $0x178] sm:$0xff] %v2840
        %2971 = vst [vmem:[%s207 + $0x180] sm:$0xff] %v2845
        %2972 = vst [vmem:[%s207 + $0x188] sm:$0xff] %v2850
        %2973 = vst [vmem:[%s207 + $0x190] sm:$0xff] %v2855
        %2974 = vst [vmem:[%s207 + $0x198] sm:$0xff] %v2860
        %2975 = vst [vmem:[%s207 + $0x1a0] sm:$0xff] %v2865
        %2976 = vst [vmem:[%s207 + $0x1a8] sm:$0xff] %v2870
        %2977 = vst [vmem:[%s207 + $0x1b0] sm:$0xff] %v2875
        %2978 = vst [vmem:[%s207 + $0x1b8] sm:$0xff] %v2880
        %2979 = vst [vmem:[%s207 + $0x1c0] sm:$0xff] %v2885
        %2980 = vst [vmem:[%s207 + $0x1c8] sm:$0xff] %v2890
        %2981 = vst [vmem:[%s207 + $0x1d0] sm:$0xff] %v2895
        %2982 = vst [vmem:[%s207 + $0x1d8] sm:$0xff] %v2900
        %2983 = vst [vmem:[%s207 + $0x1e0] sm:$0xff] %v2905
        %2984 = vst [vmem:[%s207 + $0x1e8] sm:$0xff] %v2910
        %2985 = vst [vmem:[%s207 + $0x1f0] sm:$0xff] %v2915
        %2986 = vst [vmem:[%s207 + $0x1f8] sm:$0xff] %v2920
        %s2987 = sand.u32 %s120, 1
        %s2988 = scalar_lea.sflag [#allocation3], %s2987
        %s2989 = sand.u32 %s120, 1
        %s2990 = smul.addr %s2989, 512
        %s2991 = scalar_lea.vmem [#allocation2], %s2990
        // Predicated region
        $region37: #{tpu_custom_call.1} parent=35 // pred_check
          %p2992 = pneg %p130
        $region38: #{tpu_custom_call.1} parent=35 // pred_check_branch
          %2994 = sbr.rel (%p2992) target = $region40
        $region39: #{tpu_custom_call.1} parent=35 // pred_region
          %s2995 = smul.u32 64, %s18
          %s2997 = ssub.s32 8192, 8192
          %2998 = vsyncadd %s2988, %s2997
          %s2999 = smul.addr %s2995, 128
          %s3000 = scalar_lea.hbm %s4, %s2999
          %s3001 = sshll.u32 %s2991, 4
          %s3002 = int_to_ptr.vmem [resolvable:$true] %s3001
          %3007 = dma.vmem_to_hbm [thread:$0]  %s3002, 8192, %s3000, %s2988, 128, 128, 8
        $region40: #{tpu_custom_call.1} parent=35 // pred_fallthru
          _
      $region36: #{tpu_custom_call.1} parent=5 // pred_fallthru
        _
      %p3008 = scmp.le.s32.totalorder 2, %s13
      // Predicated region
      $region41: #{tpu_custom_call.1} parent=5 // pred_check
        %p3009 = pneg %p3008
      $region42: #{tpu_custom_call.1} parent=5 // pred_check_branch
        %3011 = sbr.rel (%p3009) target = $region44
      $region43: #{tpu_custom_call.1} parent=5 // pred_region
        %s3012 = ssub.s32 %s13, 2
        // Predicated region
        $region45: #{tpu_custom_call.1} parent=43 // pred_check
          %p3013 = pneg %p136
        $region46: #{tpu_custom_call.1} parent=43 // pred_check_branch
          %3015 = sbr.rel (%p3013) target = $region48
        $region47: #{tpu_custom_call.1} parent=43 // pred_region
          %s3016 = sand.u32 %s121, 1
          %s3017 = scalar_lea.sflag [#allocation3], %s3016
          %s3018 = sand.u32 %s121, 1
          %s3019 = smul.addr %s3018, 512
          %s3020 = scalar_lea.vmem [#allocation2], %s3019
          %3021 = dma.done %s3017, 8192
        $region48: #{tpu_custom_call.1} parent=43 // pred_fallthru
          _
      $region44: #{tpu_custom_call.1} parent=5 // pred_fallthru
        _
    $region6: #{tpu_custom_call.1} parent=1 // loop_footer
      %s17 = sadd.s32 1, %s13
    $region7: #{tpu_custom_call.1} parent=1 // loop_footer_branch
      %12 = sbr.rel target = $region3
    $region8: #{tpu_custom_call.1} parent=1 // loop_exit
      _
    %3022 = vsyncpa [#allocation3], 1
    %s3023 = scalar_lea.sflag [#allocation3], 1
    %3024 = vsyncpa %s3023, 1

</llo_original>
